<compile_context>
chip_gen: v6e
topology: v6e:2x2x1
jax: 0.10.0
libtpu: 0.0.40
codegen_flags: <defaults>
</compile_context>

<pallas_src>
import functools

import jax
import jax.numpy as jnp
from jax import lax
from jax.experimental import pallas as pl
from jax.experimental.pallas import tpu as pltpu


def _round_up(x, n):
    return (x + n - 1) // n * n


# ---------------------------------------------------------------------------
# Kernels
# ---------------------------------------------------------------------------
def _w2v_kernel_vmem_w(idx_ref, w_ref, v_ref, o_ref, hid_ref):
    """Small-vocab path: whole W resident in VMEM, hidden = onehot(idx) @ W."""

    @pl.when(pl.program_id(0) == 0)
    def _hidden():
        batch = hid_ref.shape[0]
        vocab = w_ref.shape[0]
        cols = lax.broadcasted_iota(jnp.int32, (batch, vocab), 1)
        onehot = (cols == idx_ref[...]).astype(w_ref.dtype)   # exact row select
        hid_ref[...] = jnp.dot(
            onehot, w_ref[...], preferred_element_type=jnp.float32
        ).astype(hid_ref.dtype)

    # output tile = hidden @ V_tile : bf16 operands on the MXU, f32 accumulate.
    o_ref[...] = jnp.dot(
        hid_ref[...], v_ref[...], preferred_element_type=jnp.float32
    ).astype(o_ref.dtype)


def _w2v_kernel_hbm_w(idx_ref, w_hbm, v_ref, o_ref, hid_ref, sem):
    """Large-vocab path: W stays in HBM, its rows are DMA-gathered once."""
    batch = hid_ref.shape[0]

    @pl.when(pl.program_id(0) == 0)
    def _gather():
        @pl.loop(0, batch)
        def _start(b):
            pltpu.make_async_copy(
                w_hbm.at[pl.ds(idx_ref[b], 1), :],
                hid_ref.at[pl.ds(b, 1), :],
                sem.at[0],
            ).start()

        # One aggregate wait: the DMA semaphore counts bytes, and the `batch`
        # row copies above total exactly one (batch, m_pad) transfer.
        pltpu.make_async_copy(
            w_hbm.at[pl.ds(0, batch), :], hid_ref, sem.at[0]
        ).wait()

    o_ref[...] = jnp.dot(
        hid_ref[...], v_ref[...], preferred_element_type=jnp.float32
    ).astype(o_ref.dtype)


# ---------------------------------------------------------------------------
# Wrappers
# ---------------------------------------------------------------------------
def prepare_word2vec_params(W, V, param_dtype=jnp.bfloat16):
    """Cast / pad the parameters ONCE, outside the per-step hot path."""
    vocab, m = W.shape
    assert V.shape == (m, vocab)
    m_pad = _round_up(m, 16)                  # bf16 sublane packing only
    vocab_p = _round_up(vocab, 128)           # lane-dense V / output tiles
    w_p = jnp.pad(W.astype(param_dtype), ((0, 0), (0, m_pad - m)))
    v_p = jnp.pad(V.astype(param_dtype), ((0, m_pad - m), (0, vocab_p - vocab)))
    return w_p, v_p


@functools.partial(
    jax.jit, static_argnames=("vocab", "tn", "out_dtype", "gather_via_dma")
)
def word2vec_forward(idx, w_p, v_p, *, vocab, tn=4096,
                     out_dtype=jnp.bfloat16, gather_via_dma=None):
    """logits = (onehot(idx) @ W) @ V, with (w_p, v_p) from prepare_word2vec_params."""
    batch = idx.shape[0]
    vocab_w, m_pad = w_p.shape
    m_pad2, vocab_p = v_p.shape
    assert vocab_w == vocab and m_pad2 == m_pad
    assert vocab_p == _round_up(vocab, 128)

    idx = idx.astype(jnp.int32)
    out_itemsize = jnp.dtype(out_dtype).itemsize
    w_bytes = vocab * m_pad * w_p.dtype.itemsize

    # Small vocab -> keep all of W in VMEM (one bulk pipelined DMA, no per-row
    # descriptors).  Large vocab -> in-kernel HBM row gather.
    if gather_via_dma is None:
        gather_via_dma = (w_bytes > (2 << 20)) or (batch * vocab_p * 4 > (8 << 20))
    if gather_via_dma:
        assert vocab >= batch, "HBM gather path needs vocab >= batch"

    # Output-tile width: as wide as requested, but a multiple of 128 dividing
    # the 128-rounded vocab (no padded-vocab tiles) and fitting a modest VMEM
    # budget together with the resident buffers.
    extra = batch * m_pad * 2                                   # hidden scratch
    if not gather_via_dma:
        extra += 2 * w_bytes + 2 * batch * 4                    # W + idx blocks
    per_col = 3 * m_pad * w_p.dtype.itemsize + 2 * batch * out_itemsize
    budget = 16 * 1024 * 1024
    max_tn = max(128, ((budget - extra) // per_col) // 128 * 128)
    tn_eff = max(128, (min(tn, max_tn, vocab_p) // 128) * 128)
    while vocab_p % tn_eff:
        tn_eff -= 128
    num_tiles = vocab_p // tn_eff

    vmem_need = per_col * tn_eff + extra
    compiler_params = pltpu.CompilerParams(
        # Hidden scratch carries across vocab tiles -> axis must stay sequential.
        dimension_semantics=("arbitrary",),
        vmem_limit_bytes=max(int(vmem_need * 1.5) + (1 << 20), 16 * 1024 * 1024),
    )

    flops = 2 * batch * m_pad * vocab_p
    if not gather_via_dma:
        flops += 2 * batch * vocab * m_pad
    cost = pl.CostEstimate(
        flops=flops,
        transcendentals=0,
        bytes_accessed=(v_p.size * v_p.dtype.itemsize
                        + batch * vocab_p * out_itemsize
                        + (batch * m_pad * 2 if gather_via_dma else w_bytes)
                        + batch * 4),
    )

    nbuf = 3 if num_tiles >= 3 else 2            # triple-buffer the V stream

    if gather_via_dma:
        out = pl.pallas_call(
            _w2v_kernel_hbm_w,
            out_shape=jax.ShapeDtypeStruct((batch, vocab_p), out_dtype),
            grid_spec=pltpu.PrefetchScalarGridSpec(
                num_scalar_prefetch=1,                         # idx -> SMEM
                grid=(num_tiles,),
                in_specs=[
                    pl.BlockSpec(memory_space=pl.ANY),         # W stays in HBM
                    pl.BlockSpec((m_pad, tn_eff), lambda j, idx_s: (0, j),
                                 pipeline_mode=pl.Buffered(nbuf)),
                ],
                out_specs=pl.BlockSpec((batch, tn_eff), lambda j, idx_s: (0, j)),
                scratch_shapes=[
                    pltpu.VMEM((batch, m_pad), w_p.dtype),     # hidden = W[idx]
                    pltpu.SemaphoreType.DMA((1,)),
                ],
            ),
            compiler_params=compiler_params,
            cost_estimate=cost,
        )(idx, w_p, v_p)
    else:
        out = pl.pallas_call(
            _w2v_kernel_vmem_w,
            out_shape=jax.ShapeDtypeStruct((batch, vocab_p), out_dtype),
            grid_spec=pltpu.PrefetchScalarGridSpec(
                num_scalar_prefetch=0,
                grid=(num_tiles,),
                in_specs=[
                    pl.BlockSpec((batch, 1), lambda j: (0, 0)),       # idx column
                    pl.BlockSpec((vocab, m_pad), lambda j: (0, 0)),   # whole W
                    pl.BlockSpec((m_pad, tn_eff), lambda j: (0, j),
                                 pipeline_mode=pl.Buffered(nbuf)),
                ],
                out_specs=pl.BlockSpec((batch, tn_eff), lambda j: (0, j)),
                scratch_shapes=[pltpu.VMEM((batch, m_pad), w_p.dtype)],
            ),
            compiler_params=compiler_params,
            cost_estimate=cost,
        )(idx.reshape(batch, 1), w_p, v_p)

    if vocab_p != vocab:
        out = out[:, :vocab]
    return out


def word2vec_forward_from_onehot(X, W, V, **kwargs):
    """Compatibility wrapper matching the PyTorch module's forward(X).

    X must be a batch of one-hot rows (skip-gram softmax pipeline).  For the
    hot path, prefer prepare_word2vec_params() once + word2vec_forward(idx, ...)
    so no per-call argmax / pad / cast HBM traffic is generated.
    """
    idx = jnp.argmax(X, axis=-1).astype(jnp.int32)
    w_p, v_p = prepare_word2vec_params(W, V)
    return word2vec_forward(idx, w_p, v_p, vocab=W.shape[0], **kwargs)


if __name__ == "__main__":
    # Small shapes consistent with the module (vocab_size words, embedding m),
    # with enough vocab columns to exercise the tiling and both gather paths.
    batch, vocab_size, m = 64, 1024, 32
    dtype = jnp.float32

    key = jax.random.PRNGKey(0)
    k_w, k_v, k_idx = jax.random.split(key, 3)

    # Deterministic parameter init (torch.randn equivalent).
    W = jax.random.normal(k_w, (vocab_size, m), dtype=dtype)
    V = jax.random.normal(k_v, (m, vocab_size), dtype=dtype)

    # Skip-gram softmax input: a batch of one-hot rows (only used for the
    # module-style reference; the kernel consumes the indices directly).
    idx = jax.random.randint(k_idx, (batch,), 0, vocab_size, dtype=jnp.int32)
    X = jax.nn.one_hot(idx, vocab_size, dtype=dtype)

    # Reference in plain JAX with the same bf16-rounded weights the kernel sees
    # (f32 accumulation in both paths).
    w_q = W.astype(jnp.bfloat16).astype(jnp.float32)
    v_q = V.astype(jnp.bfloat16).astype(jnp.float32)
    ref = (X @ w_q) @ v_q

    # Prepare params once (outside the per-step path).
    w_p, v_p = prepare_word2vec_params(W, V)

    # 1) Module-style call (one-hot X in), auto path selection.
    out = jax.block_until_ready(word2vec_forward_from_onehot(X, W, V))
    assert out.shape == (batch, vocab_size) and out.dtype == jnp.bfloat16
    assert jnp.allclose(out.astype(jnp.float32), ref, atol=1e-2, rtol=2e-2)

    # 2) Hot-path call on both gather paths (the tn=256 run only exists to
    #    exercise a multi-tile grid / scratch persistence in this small test).
    for cfg in (dict(gather_via_dma=False),
                dict(gather_via_dma=True),
                dict(gather_via_dma=True, tn=256)):
        out = word2vec_forward(idx, w_p, v_p, vocab=vocab_size, **cfg)
        out = jax.block_until_ready(out)
        assert out.shape == (batch, vocab_size) and out.dtype == jnp.bfloat16
        assert jnp.allclose(out.astype(jnp.float32), ref, atol=1e-2, rtol=2e-2), cfg

    print("KERNEL_OK")
</pallas_src>

<mosaic_0001>
module attributes {stable_mosaic.version = 11 : i64} {
  func.func @_w2v_kernel_vmem_w(%arg0: i32, %arg1: memref<64x1xi32, #tpu.memory_space<vmem>>, %arg2: memref<1024x32xbf16, #tpu.memory_space<vmem>>, %arg3: memref<32x1024xbf16, #tpu.memory_space<vmem>>, %arg4: memref<64x1024xbf16, #tpu.memory_space<vmem>>, %arg5: memref<64x32xbf16, #tpu.memory_space<vmem>>) attributes {dimension_semantics = [#tpu.dimension_semantics<arbitrary>], iteration_bounds = array<i64: 1>, scalar_prefetch = 0 : i64, scratch_operands = 1 : i64, tpu.core_type = #tpu.core_type<tc>, window_params = [{pipeline_mode = #tpu.pipeline_mode<synchronous>, transform_indices = @transform_0, window_bounds = array<i64: 64, 1>}, {pipeline_mode = #tpu.pipeline_mode<synchronous>, transform_indices = @transform_1, window_bounds = array<i64: 1024, 32>}, {pipeline_mode = #tpu.pipeline_mode<double_buffered>, transform_indices = @transform_2, window_bounds = array<i64: 32, 1024>}, {transform_indices = @transform_3, window_bounds = array<i64: 64, 1024>}]} {
    %c0_i32 = arith.constant 0 : i32
    %0 = arith.cmpi eq, %arg0, %c0_i32 : i32
    %1 = arith.extui %0 : i1 to i32
    %c0_i32_0 = arith.constant 0 : i32
    %2 = arith.cmpi ne, %1, %c0_i32_0 : i32
    scf.if %2 {
      %8 = tpu.iota {dimensions = array<i32: 1>} : vector<64x1024xi32>
      %c0_6 = arith.constant 0 : index
      %c0_7 = arith.constant 0 : index
      %9 = vector.load %arg1[%c0_6, %c0_7] : memref<64x1xi32, #tpu.memory_space<vmem>>, vector<64x1xi32>
      %10 = vector.broadcast %9 : vector<64x1xi32> to vector<64x1024xi32>
      %11 = arith.cmpi eq, %8, %10 : vector<64x1024xi32>
      %12 = arith.extui %11 : vector<64x1024xi1> to vector<64x1024xi32>
      %13 = arith.sitofp %12 : vector<64x1024xi32> to vector<64x1024xf32>
      %14 = arith.truncf %13 : vector<64x1024xf32> to vector<64x1024xbf16>
      %c0_8 = arith.constant 0 : index
      %c0_9 = arith.constant 0 : index
      %15 = vector.load %arg2[%c0_8, %c0_9] : memref<1024x32xbf16, #tpu.memory_space<vmem>>, vector<1024x32xbf16>
      %cst_10 = arith.constant dense<0.000000e+00> : vector<64x32xf32>
      %16 = tpu.matmul %14, %15, %cst_10 {dimension_numbers = #tpu.dot_dimension_numbers<[1], [0], [0], [1], [0, 0, 1, 1], [], []>} : vector<64x1024xbf16>, vector<1024x32xbf16>, vector<64x32xf32> -> vector<64x32xf32>
      %17 = arith.truncf %16 : vector<64x32xf32> to vector<64x32xbf16>
      %c0_11 = arith.constant 0 : index
      %c0_12 = arith.constant 0 : index
      %18 = vector.load %arg5[%c0_11, %c0_12] : memref<64x32xbf16, #tpu.memory_space<vmem>>, vector<64x32xbf16>
      tpu.vector_store %arg5[%c0_11, %c0_12], %17 {strides = array<i32>} : memref<64x32xbf16, #tpu.memory_space<vmem>>, vector<64x32xbf16>,
    } else {
    }
    %c0 = arith.constant 0 : index
    %c0_1 = arith.constant 0 : index
    %3 = vector.load %arg5[%c0, %c0_1] : memref<64x32xbf16, #tpu.memory_space<vmem>>, vector<64x32xbf16>
    %c0_2 = arith.constant 0 : index
    %c0_3 = arith.constant 0 : index
    %4 = vector.load %arg3[%c0_2, %c0_3] : memref<32x1024xbf16, #tpu.memory_space<vmem>>, vector<32x1024xbf16>
    %cst = arith.constant dense<0.000000e+00> : vector<64x1024xf32>
    %5 = tpu.matmul %3, %4, %cst {dimension_numbers = #tpu.dot_dimension_numbers<[1], [0], [0], [1], [0, 0, 1, 1], [], []>} : vector<64x32xbf16>, vector<32x1024xbf16>, vector<64x1024xf32> -> vector<64x1024xf32>
    %6 = arith.truncf %5 : vector<64x1024xf32> to vector<64x1024xbf16>
    %c0_4 = arith.constant 0 : index
    %c0_5 = arith.constant 0 : index
    %7 = vector.load %arg4[%c0_4, %c0_5] : memref<64x1024xbf16, #tpu.memory_space<vmem>>, vector<64x1024xbf16>
    tpu.vector_store %arg4[%c0_4, %c0_5], %6 {strides = array<i32>} : memref<64x1024xbf16, #tpu.memory_space<vmem>>, vector<64x1024xbf16>,
    return
  }
  func.func @transform_0(%arg0: i32) -> (i32, i32) {
    %c0_i32 = arith.constant 0 : i32
    %c0_i32_0 = arith.constant 0 : i32
    %c0_i32_1 = arith.constant 0 : i32
    return %c0_i32, %c0_i32_0 : i32, i32
  }
  func.func @transform_1(%arg0: i32) -> (i32, i32) {
    %c0_i32 = arith.constant 0 : i32
    %c0_i32_0 = arith.constant 0 : i32
    %c0_i32_1 = arith.constant 0 : i32
    return %c0_i32, %c0_i32_0 : i32, i32
  }
  func.func @transform_2(%arg0: i32) -> (i32, i32) {
    %c0_i32 = arith.constant 0 : i32
    %c0_i32_0 = arith.constant 0 : i32
    return %c0_i32, %arg0 : i32, i32
  }
  func.func @transform_3(%arg0: i32) -> (i32, i32) {
    %c0_i32 = arith.constant 0 : i32
    %c0_i32_0 = arith.constant 0 : i32
    return %c0_i32, %arg0 : i32, i32
  }
}

</mosaic_0001>

<llo_original>
// kernel: word2vec_forward.1
$region0: #{word2vec_forward.1}
  #allocation0 [shape = 'u32[]', space=smem, size = 0x4, offset = 0x4, fixed_abs, tag = 'smem constant byte address 0x4 - core index']
  #allocation1 [shape = 'u32[144,128]{1,0:T(1,128)}', space=vmem, size = 0x12000, scoped, tag = 'internal scratch']
  #allocation2 [shape = 'bf16[64,32]{1,0:T(8,128)(2,1)}', space=vmem, size = 0x4000, scoped, tag = 'scratch operand']
  %s0 = inlined_call_operand.vmem [shape: s32[64,1], index: 0, kind: input, shape index: {}]
  %s1 = inlined_call_operand.vmem [shape: bf16[1024,32], index: 1, kind: input, shape index: {}]
  %s2 = inlined_call_operand.vmem [shape: bf16[32,1024], index: 2, kind: input, shape index: {}]
  %s3 = inlined_call_operand.hbm [shape: bf16[64,1024], index: 3, kind: output, shape index: {}]
  %s4 = sld [smem:[#allocation0]]
  $region26: #{word2vec_forward.1} parent=0
    _
  %s6 = ssub.s32 1, %s4
  %s7 = scalar_select 0, %s6, %s4
  $region1: #{word2vec_forward.1} parent=0
    #allocation3 [shape = 'u8[131072]{0}', space=vmem, size = 0x20000, scoped, tag = 'output window, operand 0, single buffered']
    #allocation4 [shape = 's32[1]{0}', space=sflag, size = 0x4, scoped, tag = 'scoped memory for word2vec_forward.1']
    %8 = vsyncpa [#allocation4], 0
    // Predicated region
    $region2: #{word2vec_forward.1} parent=1 // pred_check
      _
    $region3: #{word2vec_forward.1} parent=1 // pred_check_branch
      %10 = sbr.rel (0) target = $region5
    $region4: #{word2vec_forward.1} parent=1 // pred_region
      _
    $region5: #{word2vec_forward.1} parent=1 // pred_fallthru
      _
    // Predicated region
    $region6: #{word2vec_forward.1} parent=1 // pred_check
      _
    $region7: #{word2vec_forward.1} parent=1 // pred_check_branch
      %12 = sbr.rel (0) target = $region9
    $region8: #{word2vec_forward.1} parent=1 // pred_region
      _
    $region9: #{word2vec_forward.1} parent=1 // pred_fallthru
      _
    // Predicated region
    $region10: #{word2vec_forward.1} parent=1 // pred_check
      _
    $region11: #{word2vec_forward.1} parent=1 // pred_check_branch
      %14 = sbr.rel (0) target = $region13
    $region12: #{word2vec_forward.1} parent=1 // pred_region
      _
    $region13: #{word2vec_forward.1} parent=1 // pred_fallthru
      _
    %p16 = scmp.eq.s32.totalorder 0, 0
    // Predicated region
    $region14: #{word2vec_forward.1} parent=1 // pred_check
      %p17 = pneg %p16
    $region15: #{word2vec_forward.1} parent=1 // pred_check_branch
      %19 = sbr.rel (%p17) target = $region17
    $region16: #{word2vec_forward.1} parent=1 // pred_region
      %v20 = vlaneseq
      %v21 = vand.u32 %v20, 127
      %v22 = vadd.s32 %v21, 128
      %v23 = vadd.s32 %v21, 256
      %v24 = vadd.s32 %v21, 384
      %v25 = vadd.s32 %v21, 512
      %v26 = vadd.s32 %v21, 640
      %v27 = vadd.s32 %v21, 768
      %v28 = vadd.s32 %v21, 896
      %v29 = vld [vmem:[%s0] sm:$0xff]
      %v30 = vld [vmem:[%s0 + $0x8] sm:$0xff]
      %v31 = vld [vmem:[%s0 + $0x10] sm:$0xff]
      %v32 = vld [vmem:[%s0 + $0x18] sm:$0xff]
      %v33 = vld [vmem:[%s0 + $0x20] sm:$0xff]
      %v34 = vld [vmem:[%s0 + $0x28] sm:$0xff]
      %v35 = vld [vmem:[%s0 + $0x30] sm:$0xff]
      %v36 = vld [vmem:[%s0 + $0x38] sm:$0xff]
      %37 = vset.pattern.permute.xlu0 0
      %38 = vperm.xlu0 %37, %v29
      %v39 = vpop.permute.xlu0 %38
      %40 = vset.pattern.permute.xlu0 0
      %41 = vperm.xlu0 %40, %v30
      %v42 = vpop.permute.xlu0 %41
      %43 = vset.pattern.permute.xlu0 0
      %44 = vperm.xlu0 %43, %v31
      %v45 = vpop.permute.xlu0 %44
      %46 = vset.pattern.permute.xlu0 0
      %47 = vperm.xlu0 %46, %v32
      %v48 = vpop.permute.xlu0 %47
      %49 = vset.pattern.permute.xlu0 0
      %50 = vperm.xlu0 %49, %v33
      %v51 = vpop.permute.xlu0 %50
      %52 = vset.pattern.permute.xlu0 0
      %53 = vperm.xlu0 %52, %v34
      %v54 = vpop.permute.xlu0 %53
      %55 = vset.pattern.permute.xlu0 0
      %56 = vperm.xlu0 %55, %v35
      %v57 = vpop.permute.xlu0 %56
      %58 = vset.pattern.permute.xlu0 0
      %59 = vperm.xlu0 %58, %v36
      %v60 = vpop.permute.xlu0 %59
      %vm61 = vcmp.eq.s32.totalorder %v21, %v39
      %vm62 = vcmp.eq.s32.totalorder %v22, %v39
      %vm63 = vcmp.eq.s32.totalorder %v23, %v39
      %vm64 = vcmp.eq.s32.totalorder %v24, %v39
      %vm65 = vcmp.eq.s32.totalorder %v25, %v39
      %vm66 = vcmp.eq.s32.totalorder %v26, %v39
      %vm67 = vcmp.eq.s32.totalorder %v27, %v39
      %vm68 = vcmp.eq.s32.totalorder %v28, %v39
      %vm69 = vcmp.eq.s32.totalorder %v21, %v42
      %vm70 = vcmp.eq.s32.totalorder %v22, %v42
      %vm71 = vcmp.eq.s32.totalorder %v23, %v42
      %vm72 = vcmp.eq.s32.totalorder %v24, %v42
      %vm73 = vcmp.eq.s32.totalorder %v25, %v42
      %vm74 = vcmp.eq.s32.totalorder %v26, %v42
      %vm75 = vcmp.eq.s32.totalorder %v27, %v42
      %vm76 = vcmp.eq.s32.totalorder %v28, %v42
      %vm77 = vcmp.eq.s32.totalorder %v21, %v45
      %vm78 = vcmp.eq.s32.totalorder %v22, %v45
      %vm79 = vcmp.eq.s32.totalorder %v23, %v45
      %vm80 = vcmp.eq.s32.totalorder %v24, %v45
      %vm81 = vcmp.eq.s32.totalorder %v25, %v45
      %vm82 = vcmp.eq.s32.totalorder %v26, %v45
      %vm83 = vcmp.eq.s32.totalorder %v27, %v45
      %vm84 = vcmp.eq.s32.totalorder %v28, %v45
      %vm85 = vcmp.eq.s32.totalorder %v21, %v48
      %vm86 = vcmp.eq.s32.totalorder %v22, %v48
      %vm87 = vcmp.eq.s32.totalorder %v23, %v48
      %vm88 = vcmp.eq.s32.totalorder %v24, %v48
      %vm89 = vcmp.eq.s32.totalorder %v25, %v48
      %vm90 = vcmp.eq.s32.totalorder %v26, %v48
      %vm91 = vcmp.eq.s32.totalorder %v27, %v48
      %vm92 = vcmp.eq.s32.totalorder %v28, %v48
      %vm93 = vcmp.eq.s32.totalorder %v21, %v51
      %vm94 = vcmp.eq.s32.totalorder %v22, %v51
      %vm95 = vcmp.eq.s32.totalorder %v23, %v51
      %vm96 = vcmp.eq.s32.totalorder %v24, %v51
      %vm97 = vcmp.eq.s32.totalorder %v25, %v51
      %vm98 = vcmp.eq.s32.totalorder %v26, %v51
      %vm99 = vcmp.eq.s32.totalorder %v27, %v51
      %vm100 = vcmp.eq.s32.totalorder %v28, %v51
      %vm101 = vcmp.eq.s32.totalorder %v21, %v54
      %vm102 = vcmp.eq.s32.totalorder %v22, %v54
      %vm103 = vcmp.eq.s32.totalorder %v23, %v54
      %vm104 = vcmp.eq.s32.totalorder %v24, %v54
      %vm105 = vcmp.eq.s32.totalorder %v25, %v54
      %vm106 = vcmp.eq.s32.totalorder %v26, %v54
      %vm107 = vcmp.eq.s32.totalorder %v27, %v54
      %vm108 = vcmp.eq.s32.totalorder %v28, %v54
      %vm109 = vcmp.eq.s32.totalorder %v21, %v57
      %vm110 = vcmp.eq.s32.totalorder %v22, %v57
      %vm111 = vcmp.eq.s32.totalorder %v23, %v57
      %vm112 = vcmp.eq.s32.totalorder %v24, %v57
      %vm113 = vcmp.eq.s32.totalorder %v25, %v57
      %vm114 = vcmp.eq.s32.totalorder %v26, %v57
      %vm115 = vcmp.eq.s32.totalorder %v27, %v57
      %vm116 = vcmp.eq.s32.totalorder %v28, %v57
      %vm117 = vcmp.eq.s32.totalorder %v21, %v60
      %vm118 = vcmp.eq.s32.totalorder %v22, %v60
      %vm119 = vcmp.eq.s32.totalorder %v23, %v60
      %vm120 = vcmp.eq.s32.totalorder %v24, %v60
      %vm121 = vcmp.eq.s32.totalorder %v25, %v60
      %vm122 = vcmp.eq.s32.totalorder %v26, %v60
      %vm123 = vcmp.eq.s32.totalorder %v27, %v60
      %vm124 = vcmp.eq.s32.totalorder %v28, %v60
      %v125 = vsel %vm61, 1, 0
      %v126 = vsel %vm62, 1, 0
      %v127 = vsel %vm63, 1, 0
      %v128 = vsel %vm64, 1, 0
      %v129 = vsel %vm65, 1, 0
      %v130 = vsel %vm66, 1, 0
      %v131 = vsel %vm67, 1, 0
      %v132 = vsel %vm68, 1, 0
      %v133 = vsel %vm69, 1, 0
      %v134 = vsel %vm70, 1, 0
      %v135 = vsel %vm71, 1, 0
      %v136 = vsel %vm72, 1, 0
      %v137 = vsel %vm73, 1, 0
      %v138 = vsel %vm74, 1, 0
      %v139 = vsel %vm75, 1, 0
      %v140 = vsel %vm76, 1, 0
      %v141 = vsel %vm77, 1, 0
      %v142 = vsel %vm78, 1, 0
      %v143 = vsel %vm79, 1, 0
      %v144 = vsel %vm80, 1, 0
      %v145 = vsel %vm81, 1, 0
      %v146 = vsel %vm82, 1, 0
      %v147 = vsel %vm83, 1, 0
      %v148 = vsel %vm84, 1, 0
      %v149 = vsel %vm85, 1, 0
      %v150 = vsel %vm86, 1, 0
      %v151 = vsel %vm87, 1, 0
      %v152 = vsel %vm88, 1, 0
      %v153 = vsel %vm89, 1, 0
      %v154 = vsel %vm90, 1, 0
      %v155 = vsel %vm91, 1, 0
      %v156 = vsel %vm92, 1, 0
      %v157 = vsel %vm93, 1, 0
      %v158 = vsel %vm94, 1, 0
      %v159 = vsel %vm95, 1, 0
      %v160 = vsel %vm96, 1, 0
      %v161 = vsel %vm97, 1, 0
      %v162 = vsel %vm98, 1, 0
      %v163 = vsel %vm99, 1, 0
      %v164 = vsel %vm100, 1, 0
      %v165 = vsel %vm101, 1, 0
      %v166 = vsel %vm102, 1, 0
      %v167 = vsel %vm103, 1, 0
      %v168 = vsel %vm104, 1, 0
      %v169 = vsel %vm105, 1, 0
      %v170 = vsel %vm106, 1, 0
      %v171 = vsel %vm107, 1, 0
      %v172 = vsel %vm108, 1, 0
      %v173 = vsel %vm109, 1, 0
      %v174 = vsel %vm110, 1, 0
      %v175 = vsel %vm111, 1, 0
      %v176 = vsel %vm112, 1, 0
      %v177 = vsel %vm113, 1, 0
      %v178 = vsel %vm114, 1, 0
      %v179 = vsel %vm115, 1, 0
      %v180 = vsel %vm116, 1, 0
      %v181 = vsel %vm117, 1, 0
      %v182 = vsel %vm118, 1, 0
      %v183 = vsel %vm119, 1, 0
      %v184 = vsel %vm120, 1, 0
      %v185 = vsel %vm121, 1, 0
      %v186 = vsel %vm122, 1, 0
      %v187 = vsel %vm123, 1, 0
      %v188 = vsel %vm124, 1, 0
      %v189 = vcvt.s32.f32 %v125
      %v190 = vcvt.s32.f32 %v126
      %v191 = vcvt.s32.f32 %v127
      %v192 = vcvt.s32.f32 %v128
      %v193 = vcvt.s32.f32 %v129
      %v194 = vcvt.s32.f32 %v130
      %v195 = vcvt.s32.f32 %v131
      %v196 = vcvt.s32.f32 %v132
      %v197 = vcvt.s32.f32 %v133
      %v198 = vcvt.s32.f32 %v134
      %v199 = vcvt.s32.f32 %v135
      %v200 = vcvt.s32.f32 %v136
      %v201 = vcvt.s32.f32 %v137
      %v202 = vcvt.s32.f32 %v138
      %v203 = vcvt.s32.f32 %v139
      %v204 = vcvt.s32.f32 %v140
      %v205 = vcvt.s32.f32 %v141
      %v206 = vcvt.s32.f32 %v142
      %v207 = vcvt.s32.f32 %v143
      %v208 = vcvt.s32.f32 %v144
      %v209 = vcvt.s32.f32 %v145
      %v210 = vcvt.s32.f32 %v146
      %v211 = vcvt.s32.f32 %v147
      %v212 = vcvt.s32.f32 %v148
      %v213 = vcvt.s32.f32 %v149
      %v214 = vcvt.s32.f32 %v150
      %v215 = vcvt.s32.f32 %v151
      %v216 = vcvt.s32.f32 %v152
      %v217 = vcvt.s32.f32 %v153
      %v218 = vcvt.s32.f32 %v154
      %v219 = vcvt.s32.f32 %v155
      %v220 = vcvt.s32.f32 %v156
      %v221 = vcvt.s32.f32 %v157
      %v222 = vcvt.s32.f32 %v158
      %v223 = vcvt.s32.f32 %v159
      %v224 = vcvt.s32.f32 %v160
      %v225 = vcvt.s32.f32 %v161
      %v226 = vcvt.s32.f32 %v162
      %v227 = vcvt.s32.f32 %v163
      %v228 = vcvt.s32.f32 %v164
      %v229 = vcvt.s32.f32 %v165
      %v230 = vcvt.s32.f32 %v166
      %v231 = vcvt.s32.f32 %v167
      %v232 = vcvt.s32.f32 %v168
      %v233 = vcvt.s32.f32 %v169
      %v234 = vcvt.s32.f32 %v170
      %v235 = vcvt.s32.f32 %v171
      %v236 = vcvt.s32.f32 %v172
      %v237 = vcvt.s32.f32 %v173
      %v238 = vcvt.s32.f32 %v174
      %v239 = vcvt.s32.f32 %v175
      %v240 = vcvt.s32.f32 %v176
      %v241 = vcvt.s32.f32 %v177
      %v242 = vcvt.s32.f32 %v178
      %v243 = vcvt.s32.f32 %v179
      %v244 = vcvt.s32.f32 %v180
      %v245 = vcvt.s32.f32 %v181
      %v246 = vcvt.s32.f32 %v182
      %v247 = vcvt.s32.f32 %v183
      %v248 = vcvt.s32.f32 %v184
      %v249 = vcvt.s32.f32 %v185
      %v250 = vcvt.s32.f32 %v186
      %v251 = vcvt.s32.f32 %v187
      %v252 = vcvt.s32.f32 %v188
      %v253 = vpack.c.bf16 %v197, %v189
      %v254 = vpack.c.bf16 %v198, %v190
      %v255 = vpack.c.bf16 %v199, %v191
      %v256 = vpack.c.bf16 %v200, %v192
      %v257 = vpack.c.bf16 %v201, %v193
      %v258 = vpack.c.bf16 %v202, %v194
      %v259 = vpack.c.bf16 %v203, %v195
      %v260 = vpack.c.bf16 %v204, %v196
      %v261 = vpack.c.bf16 %v213, %v205
      %v262 = vpack.c.bf16 %v214, %v206
      %v263 = vpack.c.bf16 %v215, %v207
      %v264 = vpack.c.bf16 %v216, %v208
      %v265 = vpack.c.bf16 %v217, %v209
      %v266 = vpack.c.bf16 %v218, %v210
      %v267 = vpack.c.bf16 %v219, %v211
      %v268 = vpack.c.bf16 %v220, %v212
      %v269 = vpack.c.bf16 %v229, %v221
      %v270 = vpack.c.bf16 %v230, %v222
      %v271 = vpack.c.bf16 %v231, %v223
      %v272 = vpack.c.bf16 %v232, %v224
      %v273 = vpack.c.bf16 %v233, %v225
      %v274 = vpack.c.bf16 %v234, %v226
      %v275 = vpack.c.bf16 %v235, %v227
      %v276 = vpack.c.bf16 %v236, %v228
      %v277 = vpack.c.bf16 %v245, %v237
      %v278 = vpack.c.bf16 %v246, %v238
      %v279 = vpack.c.bf16 %v247, %v239
      %v280 = vpack.c.bf16 %v248, %v240
      %v281 = vpack.c.bf16 %v249, %v241
      %v282 = vpack.c.bf16 %v250, %v242
      %v283 = vpack.c.bf16 %v251, %v243
      %v284 = vpack.c.bf16 %v252, %v244
      %v285 = vld [vmem:[%s1] sm:$0xf]
      %v286 = vld [vmem:[%s1 + $0x4] sm:$0xf]
      %v287 = vld [vmem:[%s1 + $0x8] sm:$0xf]
      %v288 = vld [vmem:[%s1 + $0xc] sm:$0xf]
      %v289 = vld [vmem:[%s1 + $0x10] sm:$0xf]
      %v290 = vld [vmem:[%s1 + $0x14] sm:$0xf]
      %v291 = vld [vmem:[%s1 + $0x18] sm:$0xf]
      %v292 = vld [vmem:[%s1 + $0x1c] sm:$0xf]
      %v293 = vld [vmem:[%s1 + $0x20] sm:$0xf]
      %v294 = vld [vmem:[%s1 + $0x24] sm:$0xf]
      %v295 = vld [vmem:[%s1 + $0x28] sm:$0xf]
      %v296 = vld [vmem:[%s1 + $0x2c] sm:$0xf]
      %v297 = vld [vmem:[%s1 + $0x30] sm:$0xf]
      %v298 = vld [vmem:[%s1 + $0x34] sm:$0xf]
      %v299 = vld [vmem:[%s1 + $0x38] sm:$0xf]
      %v300 = vld [vmem:[%s1 + $0x3c] sm:$0xf]
      %v301 = vld [vmem:[%s1 + $0x40] sm:$0xf]
      %v302 = vld [vmem:[%s1 + $0x44] sm:$0xf]
      %v303 = vld [vmem:[%s1 + $0x48] sm:$0xf]
      %v304 = vld [vmem:[%s1 + $0x4c] sm:$0xf]
      %v305 = vld [vmem:[%s1 + $0x50] sm:$0xf]
      %v306 = vld [vmem:[%s1 + $0x54] sm:$0xf]
      %v307 = vld [vmem:[%s1 + $0x58] sm:$0xf]
      %v308 = vld [vmem:[%s1 + $0x5c] sm:$0xf]
      %v309 = vld [vmem:[%s1 + $0x60] sm:$0xf]
      %v310 = vld [vmem:[%s1 + $0x64] sm:$0xf]
      %v311 = vld [vmem:[%s1 + $0x68] sm:$0xf]
      %v312 = vld [vmem:[%s1 + $0x6c] sm:$0xf]
      %v313 = vld [vmem:[%s1 + $0x70] sm:$0xf]
      %v314 = vld [vmem:[%s1 + $0x74] sm:$0xf]
      %v315 = vld [vmem:[%s1 + $0x78] sm:$0xf]
      %v316 = vld [vmem:[%s1 + $0x7c] sm:$0xf]
      %v317 = vld [vmem:[%s1 + $0x80] sm:$0xf]
      %v318 = vld [vmem:[%s1 + $0x84] sm:$0xf]
      %v319 = vld [vmem:[%s1 + $0x88] sm:$0xf]
      %v320 = vld [vmem:[%s1 + $0x8c] sm:$0xf]
      %v321 = vld [vmem:[%s1 + $0x90] sm:$0xf]
      %v322 = vld [vmem:[%s1 + $0x94] sm:$0xf]
      %v323 = vld [vmem:[%s1 + $0x98] sm:$0xf]
      %v324 = vld [vmem:[%s1 + $0x9c] sm:$0xf]
      %v325 = vld [vmem:[%s1 + $0xa0] sm:$0xf]
      %v326 = vld [vmem:[%s1 + $0xa4] sm:$0xf]
      %v327 = vld [vmem:[%s1 + $0xa8] sm:$0xf]
      %v328 = vld [vmem:[%s1 + $0xac] sm:$0xf]
      %v329 = vld [vmem:[%s1 + $0xb0] sm:$0xf]
      %v330 = vld [vmem:[%s1 + $0xb4] sm:$0xf]
      %v331 = vld [vmem:[%s1 + $0xb8] sm:$0xf]
      %v332 = vld [vmem:[%s1 + $0xbc] sm:$0xf]
      %v333 = vld [vmem:[%s1 + $0xc0] sm:$0xf]
      %v334 = vld [vmem:[%s1 + $0xc4] sm:$0xf]
      %v335 = vld [vmem:[%s1 + $0xc8] sm:$0xf]
      %v336 = vld [vmem:[%s1 + $0xcc] sm:$0xf]
      %v337 = vld [vmem:[%s1 + $0xd0] sm:$0xf]
      %v338 = vld [vmem:[%s1 + $0xd4] sm:$0xf]
      %v339 = vld [vmem:[%s1 + $0xd8] sm:$0xf]
      %v340 = vld [vmem:[%s1 + $0xdc] sm:$0xf]
      %v341 = vld [vmem:[%s1 + $0xe0] sm:$0xf]
      %v342 = vld [vmem:[%s1 + $0xe4] sm:$0xf]
      %v343 = vld [vmem:[%s1 + $0xe8] sm:$0xf]
      %v344 = vld [vmem:[%s1 + $0xec] sm:$0xf]
      %v345 = vld [vmem:[%s1 + $0xf0] sm:$0xf]
      %v346 = vld [vmem:[%s1 + $0xf4] sm:$0xf]
      %v347 = vld [vmem:[%s1 + $0xf8] sm:$0xf]
      %v348 = vld [vmem:[%s1 + $0xfc] sm:$0xf]
      %v349 = vld [vmem:[%s1 + $0x100] sm:$0xf]
      %v350 = vld [vmem:[%s1 + $0x104] sm:$0xf]
      %v351 = vld [vmem:[%s1 + $0x108] sm:$0xf]
      %v352 = vld [vmem:[%s1 + $0x10c] sm:$0xf]
      %v353 = vld [vmem:[%s1 + $0x110] sm:$0xf]
      %v354 = vld [vmem:[%s1 + $0x114] sm:$0xf]
      %v355 = vld [vmem:[%s1 + $0x118] sm:$0xf]
      %v356 = vld [vmem:[%s1 + $0x11c] sm:$0xf]
      %v357 = vld [vmem:[%s1 + $0x120] sm:$0xf]
      %v358 = vld [vmem:[%s1 + $0x124] sm:$0xf]
      %v359 = vld [vmem:[%s1 + $0x128] sm:$0xf]
      %v360 = vld [vmem:[%s1 + $0x12c] sm:$0xf]
      %v361 = vld [vmem:[%s1 + $0x130] sm:$0xf]
      %v362 = vld [vmem:[%s1 + $0x134] sm:$0xf]
      %v363 = vld [vmem:[%s1 + $0x138] sm:$0xf]
      %v364 = vld [vmem:[%s1 + $0x13c] sm:$0xf]
      %v365 = vld [vmem:[%s1 + $0x140] sm:$0xf]
      %v366 = vld [vmem:[%s1 + $0x144] sm:$0xf]
      %v367 = vld [vmem:[%s1 + $0x148] sm:$0xf]
      %v368 = vld [vmem:[%s1 + $0x14c] sm:$0xf]
      %v369 = vld [vmem:[%s1 + $0x150] sm:$0xf]
      %v370 = vld [vmem:[%s1 + $0x154] sm:$0xf]
      %v371 = vld [vmem:[%s1 + $0x158] sm:$0xf]
      %v372 = vld [vmem:[%s1 + $0x15c] sm:$0xf]
      %v373 = vld [vmem:[%s1 + $0x160] sm:$0xf]
      %v374 = vld [vmem:[%s1 + $0x164] sm:$0xf]
      %v375 = vld [vmem:[%s1 + $0x168] sm:$0xf]
      %v376 = vld [vmem:[%s1 + $0x16c] sm:$0xf]
      %v377 = vld [vmem:[%s1 + $0x170] sm:$0xf]
      %v378 = vld [vmem:[%s1 + $0x174] sm:$0xf]
      %v379 = vld [vmem:[%s1 + $0x178] sm:$0xf]
      %v380 = vld [vmem:[%s1 + $0x17c] sm:$0xf]
      %v381 = vld [vmem:[%s1 + $0x180] sm:$0xf]
      %v382 = vld [vmem:[%s1 + $0x184] sm:$0xf]
      %v383 = vld [vmem:[%s1 + $0x188] sm:$0xf]
      %v384 = vld [vmem:[%s1 + $0x18c] sm:$0xf]
      %v385 = vld [vmem:[%s1 + $0x190] sm:$0xf]
      %v386 = vld [vmem:[%s1 + $0x194] sm:$0xf]
      %v387 = vld [vmem:[%s1 + $0x198] sm:$0xf]
      %v388 = vld [vmem:[%s1 + $0x19c] sm:$0xf]
      %v389 = vld [vmem:[%s1 + $0x1a0] sm:$0xf]
      %v390 = vld [vmem:[%s1 + $0x1a4] sm:$0xf]
      %v391 = vld [vmem:[%s1 + $0x1a8] sm:$0xf]
      %v392 = vld [vmem:[%s1 + $0x1ac] sm:$0xf]
      %v393 = vld [vmem:[%s1 + $0x1b0] sm:$0xf]
      %v394 = vld [vmem:[%s1 + $0x1b4] sm:$0xf]
      %v395 = vld [vmem:[%s1 + $0x1b8] sm:$0xf]
      %v396 = vld [vmem:[%s1 + $0x1bc] sm:$0xf]
      %v397 = vld [vmem:[%s1 + $0x1c0] sm:$0xf]
      %v398 = vld [vmem:[%s1 + $0x1c4] sm:$0xf]
      %v399 = vld [vmem:[%s1 + $0x1c8] sm:$0xf]
      %v400 = vld [vmem:[%s1 + $0x1cc] sm:$0xf]
      %v401 = vld [vmem:[%s1 + $0x1d0] sm:$0xf]
      %v402 = vld [vmem:[%s1 + $0x1d4] sm:$0xf]
      %v403 = vld [vmem:[%s1 + $0x1d8] sm:$0xf]
      %v404 = vld [vmem:[%s1 + $0x1dc] sm:$0xf]
      %v405 = vld [vmem:[%s1 + $0x1e0] sm:$0xf]
      %v406 = vld [vmem:[%s1 + $0x1e4] sm:$0xf]
      %v407 = vld [vmem:[%s1 + $0x1e8] sm:$0xf]
      %v408 = vld [vmem:[%s1 + $0x1ec] sm:$0xf]
      %v409 = vld [vmem:[%s1 + $0x1f0] sm:$0xf]
      %v410 = vld [vmem:[%s1 + $0x1f4] sm:$0xf]
      %v411 = vld [vmem:[%s1 + $0x1f8] sm:$0xf]
      %v412 = vld [vmem:[%s1 + $0x1fc] sm:$0xf]
      %v541 = vunpack.c.l.b16 %v285
      %v542 = vunpack.c.l.b16 %v286
      %v543 = vunpack.c.l.b16 %v287
      %v544 = vunpack.c.l.b16 %v288
      %v545 = vunpack.c.l.b16 %v289
      %v546 = vunpack.c.l.b16 %v290
      %v547 = vunpack.c.l.b16 %v291
      %v548 = vunpack.c.l.b16 %v292
      %v549 = vunpack.c.l.b16 %v293
      %v550 = vunpack.c.l.b16 %v294
      %v551 = vunpack.c.l.b16 %v295
      %v552 = vunpack.c.l.b16 %v296
      %v553 = vunpack.c.l.b16 %v297
      %v554 = vunpack.c.l.b16 %v298
      %v555 = vunpack.c.l.b16 %v299
      %v556 = vunpack.c.l.b16 %v300
      %v557 = vunpack.c.l.b16 %v301
      %v558 = vunpack.c.l.b16 %v302
      %v559 = vunpack.c.l.b16 %v303
      %v560 = vunpack.c.l.b16 %v304
      %v561 = vunpack.c.l.b16 %v305
      %v562 = vunpack.c.l.b16 %v306
      %v563 = vunpack.c.l.b16 %v307
      %v564 = vunpack.c.l.b16 %v308
      %v565 = vunpack.c.l.b16 %v309
      %v566 = vunpack.c.l.b16 %v310
      %v567 = vunpack.c.l.b16 %v311
      %v568 = vunpack.c.l.b16 %v312
      %v569 = vunpack.c.l.b16 %v313
      %v570 = vunpack.c.l.b16 %v314
      %v571 = vunpack.c.l.b16 %v315
      %v572 = vunpack.c.l.b16 %v316
      %v573 = vunpack.c.l.b16 %v317
      %v574 = vunpack.c.l.b16 %v318
      %v575 = vunpack.c.l.b16 %v319
      %v576 = vunpack.c.l.b16 %v320
      %v577 = vunpack.c.l.b16 %v321
      %v578 = vunpack.c.l.b16 %v322
      %v579 = vunpack.c.l.b16 %v323
      %v580 = vunpack.c.l.b16 %v324
      %v581 = vunpack.c.l.b16 %v325
      %v582 = vunpack.c.l.b16 %v326
      %v583 = vunpack.c.l.b16 %v327
      %v584 = vunpack.c.l.b16 %v328
      %v585 = vunpack.c.l.b16 %v329
      %v586 = vunpack.c.l.b16 %v330
      %v587 = vunpack.c.l.b16 %v331
      %v588 = vunpack.c.l.b16 %v332
      %v589 = vunpack.c.l.b16 %v333
      %v590 = vunpack.c.l.b16 %v334
      %v591 = vunpack.c.l.b16 %v335
      %v592 = vunpack.c.l.b16 %v336
      %v593 = vunpack.c.l.b16 %v337
      %v594 = vunpack.c.l.b16 %v338
      %v595 = vunpack.c.l.b16 %v339
      %v596 = vunpack.c.l.b16 %v340
      %v597 = vunpack.c.l.b16 %v341
      %v598 = vunpack.c.l.b16 %v342
      %v599 = vunpack.c.l.b16 %v343
      %v600 = vunpack.c.l.b16 %v344
      %v601 = vunpack.c.l.b16 %v345
      %v602 = vunpack.c.l.b16 %v346
      %v603 = vunpack.c.l.b16 %v347
      %v604 = vunpack.c.l.b16 %v348
      %v605 = vunpack.c.l.b16 %v349
      %v606 = vunpack.c.l.b16 %v350
      %v607 = vunpack.c.l.b16 %v351
      %v608 = vunpack.c.l.b16 %v352
      %v609 = vunpack.c.l.b16 %v353
      %v610 = vunpack.c.l.b16 %v354
      %v611 = vunpack.c.l.b16 %v355
      %v612 = vunpack.c.l.b16 %v356
      %v613 = vunpack.c.l.b16 %v357
      %v614 = vunpack.c.l.b16 %v358
      %v615 = vunpack.c.l.b16 %v359
      %v616 = vunpack.c.l.b16 %v360
      %v617 = vunpack.c.l.b16 %v361
      %v618 = vunpack.c.l.b16 %v362
      %v619 = vunpack.c.l.b16 %v363
      %v620 = vunpack.c.l.b16 %v364
      %v621 = vunpack.c.l.b16 %v365
      %v622 = vunpack.c.l.b16 %v366
      %v623 = vunpack.c.l.b16 %v367
      %v624 = vunpack.c.l.b16 %v368
      %v625 = vunpack.c.l.b16 %v369
      %v626 = vunpack.c.l.b16 %v370
      %v627 = vunpack.c.l.b16 %v371
      %v628 = vunpack.c.l.b16 %v372
      %v629 = vunpack.c.l.b16 %v373
      %v630 = vunpack.c.l.b16 %v374
      %v631 = vunpack.c.l.b16 %v375
      %v632 = vunpack.c.l.b16 %v376
      %v633 = vunpack.c.l.b16 %v377
      %v634 = vunpack.c.l.b16 %v378
      %v635 = vunpack.c.l.b16 %v379
      %v636 = vunpack.c.l.b16 %v380
      %v637 = vunpack.c.l.b16 %v381
      %v638 = vunpack.c.l.b16 %v382
      %v639 = vunpack.c.l.b16 %v383
      %v640 = vunpack.c.l.b16 %v384
      %v641 = vunpack.c.l.b16 %v385
      %v642 = vunpack.c.l.b16 %v386
      %v643 = vunpack.c.l.b16 %v387
      %v644 = vunpack.c.l.b16 %v388
      %v645 = vunpack.c.l.b16 %v389
      %v646 = vunpack.c.l.b16 %v390
      %v647 = vunpack.c.l.b16 %v391
      %v648 = vunpack.c.l.b16 %v392
      %v649 = vunpack.c.l.b16 %v393
      %v650 = vunpack.c.l.b16 %v394
      %v651 = vunpack.c.l.b16 %v395
      %v652 = vunpack.c.l.b16 %v396
      %v653 = vunpack.c.l.b16 %v397
      %v654 = vunpack.c.l.b16 %v398
      %v655 = vunpack.c.l.b16 %v399
      %v656 = vunpack.c.l.b16 %v400
      %v657 = vunpack.c.l.b16 %v401
      %v658 = vunpack.c.l.b16 %v402
      %v659 = vunpack.c.l.b16 %v403
      %v660 = vunpack.c.l.b16 %v404
      %v661 = vunpack.c.l.b16 %v405
      %v662 = vunpack.c.l.b16 %v406
      %v663 = vunpack.c.l.b16 %v407
      %v664 = vunpack.c.l.b16 %v408
      %v665 = vunpack.c.l.b16 %v409
      %v666 = vunpack.c.l.b16 %v410
      %v667 = vunpack.c.l.b16 %v411
      %v668 = vunpack.c.l.b16 %v412
      %v669 = vpack.c.b16 %v542, %v541
      %v670 = vpack.c.b16 %v544, %v543
      %v671 = vpack.c.b16 %v546, %v545
      %v672 = vpack.c.b16 %v548, %v547
      %v673 = vpack.c.b16 %v550, %v549
      %v674 = vpack.c.b16 %v552, %v551
      %v675 = vpack.c.b16 %v554, %v553
      %v676 = vpack.c.b16 %v556, %v555
      %v677 = vpack.c.b16 %v558, %v557
      %v678 = vpack.c.b16 %v560, %v559
      %v679 = vpack.c.b16 %v562, %v561
      %v680 = vpack.c.b16 %v564, %v563
      %v681 = vpack.c.b16 %v566, %v565
      %v682 = vpack.c.b16 %v568, %v567
      %v683 = vpack.c.b16 %v570, %v569
      %v684 = vpack.c.b16 %v572, %v571
      %v685 = vpack.c.b16 %v574, %v573
      %v686 = vpack.c.b16 %v576, %v575
      %v687 = vpack.c.b16 %v578, %v577
      %v688 = vpack.c.b16 %v580, %v579
      %v689 = vpack.c.b16 %v582, %v581
      %v690 = vpack.c.b16 %v584, %v583
      %v691 = vpack.c.b16 %v586, %v585
      %v692 = vpack.c.b16 %v588, %v587
      %v693 = vpack.c.b16 %v590, %v589
      %v694 = vpack.c.b16 %v592, %v591
      %v695 = vpack.c.b16 %v594, %v593
      %v696 = vpack.c.b16 %v596, %v595
      %v697 = vpack.c.b16 %v598, %v597
      %v698 = vpack.c.b16 %v600, %v599
      %v699 = vpack.c.b16 %v602, %v601
      %v700 = vpack.c.b16 %v604, %v603
      %v701 = vpack.c.b16 %v606, %v605
      %v702 = vpack.c.b16 %v608, %v607
      %v703 = vpack.c.b16 %v610, %v609
      %v704 = vpack.c.b16 %v612, %v611
      %v705 = vpack.c.b16 %v614, %v613
      %v706 = vpack.c.b16 %v616, %v615
      %v707 = vpack.c.b16 %v618, %v617
      %v708 = vpack.c.b16 %v620, %v619
      %v709 = vpack.c.b16 %v622, %v621
      %v710 = vpack.c.b16 %v624, %v623
      %v711 = vpack.c.b16 %v626, %v625
      %v712 = vpack.c.b16 %v628, %v627
      %v713 = vpack.c.b16 %v630, %v629
      %v714 = vpack.c.b16 %v632, %v631
      %v715 = vpack.c.b16 %v634, %v633
      %v716 = vpack.c.b16 %v636, %v635
      %v717 = vpack.c.b16 %v638, %v637
      %v718 = vpack.c.b16 %v640, %v639
      %v719 = vpack.c.b16 %v642, %v641
      %v720 = vpack.c.b16 %v644, %v643
      %v721 = vpack.c.b16 %v646, %v645
      %v722 = vpack.c.b16 %v648, %v647
      %v723 = vpack.c.b16 %v650, %v649
      %v724 = vpack.c.b16 %v652, %v651
      %v725 = vpack.c.b16 %v654, %v653
      %v726 = vpack.c.b16 %v656, %v655
      %v727 = vpack.c.b16 %v658, %v657
      %v728 = vpack.c.b16 %v660, %v659
      %v729 = vpack.c.b16 %v662, %v661
      %v730 = vpack.c.b16 %v664, %v663
      %v731 = vpack.c.b16 %v666, %v665
      %v732 = vpack.c.b16 %v668, %v667
      %797 = vmatprep.subr.bf16.mxu0 0
      %798 = vmatpush1.bf16.msra.mxu0 %v676
      %799 = vmatprep.subr.bf16.mxu0 0
      %800 = vmatpush1.bf16.msra.mxu0 %v675
      %801 = vmatprep.subr.bf16.mxu0 0
      %802 = vmatpush1.bf16.msra.mxu0 %v674
      %803 = vmatprep.subr.bf16.mxu0 0
      %804 = vmatpush1.bf16.msra.mxu0 %v673
      %805 = vmatprep.subr.bf16.mxu0 0
      %806 = vmatpush1.bf16.msra.mxu0 %v672
      %807 = vmatprep.subr.bf16.mxu0 0
      %808 = vmatpush1.bf16.msra.mxu0 %v671
      %809 = vmatprep.subr.bf16.mxu0 0
      %810 = vmatpush1.bf16.msra.mxu0 %v670
      %811 = vmatprep.subr.bf16.mxu0 0
      %812 = vmatpush1.bf16.msra.mxu0 %v669
      %813 = vmatprep.subr.bf16.mxu0 0
      %814 = vmatpush2.bf16.msra.mxu0 %v684
      %815 = vmatprep.subr.bf16.mxu0 0
      %816 = vmatpush2.bf16.msra.mxu0 %v683
      %817 = vmatprep.subr.bf16.mxu0 0
      %818 = vmatpush2.bf16.msra.mxu0 %v682
      %819 = vmatprep.subr.bf16.mxu0 0
      %820 = vmatpush2.bf16.msra.mxu0 %v681
      %821 = vmatprep.subr.bf16.mxu0 0
      %822 = vmatpush2.bf16.msra.mxu0 %v680
      %823 = vmatprep.subr.bf16.mxu0 0
      %824 = vmatpush2.bf16.msra.mxu0 %v679
      %825 = vmatprep.subr.bf16.mxu0 0
      %826 = vmatpush2.bf16.msra.mxu0 %v678
      %827 = vmatprep.subr.bf16.mxu0 0
      %828 = vmatpush2.bf16.msra.mxu0 %v677
      %829 = vmatprep.mubr.bf16.mxu0 %v254
      %830 = vmatmul.mubr.bf16.gmra.mxu0 %v253
      %v831 = vpop.f32.mrf.mxu0
      %v832 = vadd.f32 0.0, %v831
      %v833 = vpop.f32.mrf.mxu0
      %v834 = vpop.f32.mrf.mxu0
      %v835 = vadd.f32 0.0, %v834
      %v836 = vpop.f32.mrf.mxu0
      %837 = vmatprep.mubr.bf16.mxu0 %v262
      %838 = vmatmul.mubr.bf16.gmra.mxu0 %v261
      %v839 = vpop.f32.mrf.mxu0
      %v840 = vadd.f32 0.0, %v839
      %v841 = vpop.f32.mrf.mxu0
      %v842 = vpop.f32.mrf.mxu0
      %v843 = vadd.f32 0.0, %v842
      %v844 = vpop.f32.mrf.mxu0
      %845 = vmatprep.mubr.bf16.mxu0 %v270
      %846 = vmatmul.mubr.bf16.gmra.mxu0 %v269
      %v847 = vpop.f32.mrf.mxu0
      %v848 = vadd.f32 0.0, %v847
      %v849 = vpop.f32.mrf.mxu0
      %v850 = vpop.f32.mrf.mxu0
      %v851 = vadd.f32 0.0, %v850
      %v852 = vpop.f32.mrf.mxu0
      %853 = vmatprep.mubr.bf16.mxu0 %v278
      %854 = vmatmul.mubr.bf16.gmra.mxu0 %v277
      %v855 = vpop.f32.mrf.mxu0
      %v856 = vadd.f32 0.0, %v855
      %v857 = vpop.f32.mrf.mxu0
      %v858 = vpop.f32.mrf.mxu0
      %v859 = vadd.f32 0.0, %v858
      %v860 = vpop.f32.mrf.mxu0
      %861 = vdwg.mxu0
      %862 = vmatprep.subr.bf16.mxu0 0
      %863 = vmatpush1.bf16.msra.mxu0 %v692
      %864 = vmatprep.subr.bf16.mxu0 0
      %865 = vmatpush1.bf16.msra.mxu0 %v691
      %866 = vmatprep.subr.bf16.mxu0 0
      %867 = vmatpush1.bf16.msra.mxu0 %v690
      %868 = vmatprep.subr.bf16.mxu0 0
      %869 = vmatpush1.bf16.msra.mxu0 %v689
      %870 = vmatprep.subr.bf16.mxu0 0
      %871 = vmatpush1.bf16.msra.mxu0 %v688
      %872 = vmatprep.subr.bf16.mxu0 0
      %873 = vmatpush1.bf16.msra.mxu0 %v687
      %874 = vmatprep.subr.bf16.mxu0 0
      %875 = vmatpush1.bf16.msra.mxu0 %v686
      %876 = vmatprep.subr.bf16.mxu0 0
      %877 = vmatpush1.bf16.msra.mxu0 %v685
      %878 = vmatprep.subr.bf16.mxu0 0
      %879 = vmatpush2.bf16.msra.mxu0 %v700
      %880 = vmatprep.subr.bf16.mxu0 0
      %881 = vmatpush2.bf16.msra.mxu0 %v699
      %882 = vmatprep.subr.bf16.mxu0 0
      %883 = vmatpush2.bf16.msra.mxu0 %v698
      %884 = vmatprep.subr.bf16.mxu0 0
      %885 = vmatpush2.bf16.msra.mxu0 %v697
      %886 = vmatprep.subr.bf16.mxu0 0
      %887 = vmatpush2.bf16.msra.mxu0 %v696
      %888 = vmatprep.subr.bf16.mxu0 0
      %889 = vmatpush2.bf16.msra.mxu0 %v695
      %890 = vmatprep.subr.bf16.mxu0 0
      %891 = vmatpush2.bf16.msra.mxu0 %v694
      %892 = vmatprep.subr.bf16.mxu0 0
      %893 = vmatpush2.bf16.msra.mxu0 %v693
      %894 = vmatprep.mubr.bf16.mxu0 %v256
      %895 = vmatmul.mubr.bf16.gmra.mxu0 %v255
      %v896 = vpop.f32.mrf.mxu0
      %v897 = vadd.f32 %v832, %v896
      %v898 = vpop.f32.mrf.mxu0
      %v899 = vpop.f32.mrf.mxu0
      %v900 = vadd.f32 %v835, %v899
      %v901 = vpop.f32.mrf.mxu0
      %902 = vmatprep.mubr.bf16.mxu0 %v264
      %903 = vmatmul.mubr.bf16.gmra.mxu0 %v263
      %v904 = vpop.f32.mrf.mxu0
      %v905 = vadd.f32 %v840, %v904
      %v906 = vpop.f32.mrf.mxu0
      %v907 = vpop.f32.mrf.mxu0
      %v908 = vadd.f32 %v843, %v907
      %v909 = vpop.f32.mrf.mxu0
      %910 = vmatprep.mubr.bf16.mxu0 %v272
      %911 = vmatmul.mubr.bf16.gmra.mxu0 %v271
      %v912 = vpop.f32.mrf.mxu0
      %v913 = vadd.f32 %v848, %v912
      %v914 = vpop.f32.mrf.mxu0
      %v915 = vpop.f32.mrf.mxu0
      %v916 = vadd.f32 %v851, %v915
      %v917 = vpop.f32.mrf.mxu0
      %918 = vmatprep.mubr.bf16.mxu0 %v280
      %919 = vmatmul.mubr.bf16.gmra.mxu0 %v279
      %v920 = vpop.f32.mrf.mxu0
      %v921 = vadd.f32 %v856, %v920
      %v922 = vpop.f32.mrf.mxu0
      %v923 = vpop.f32.mrf.mxu0
      %v924 = vadd.f32 %v859, %v923
      %v925 = vpop.f32.mrf.mxu0
      %926 = vdwg.mxu0
      %927 = vmatprep.subr.bf16.mxu0 0
      %928 = vmatpush1.bf16.msra.mxu0 %v708
      %929 = vmatprep.subr.bf16.mxu0 0
      %930 = vmatpush1.bf16.msra.mxu0 %v707
      %931 = vmatprep.subr.bf16.mxu0 0
      %932 = vmatpush1.bf16.msra.mxu0 %v706
      %933 = vmatprep.subr.bf16.mxu0 0
      %934 = vmatpush1.bf16.msra.mxu0 %v705
      %935 = vmatprep.subr.bf16.mxu0 0
      %936 = vmatpush1.bf16.msra.mxu0 %v704
      %937 = vmatprep.subr.bf16.mxu0 0
      %938 = vmatpush1.bf16.msra.mxu0 %v703
      %939 = vmatprep.subr.bf16.mxu0 0
      %940 = vmatpush1.bf16.msra.mxu0 %v702
      %941 = vmatprep.subr.bf16.mxu0 0
      %942 = vmatpush1.bf16.msra.mxu0 %v701
      %943 = vmatprep.subr.bf16.mxu0 0
      %944 = vmatpush2.bf16.msra.mxu0 %v716
      %945 = vmatprep.subr.bf16.mxu0 0
      %946 = vmatpush2.bf16.msra.mxu0 %v715
      %947 = vmatprep.subr.bf16.mxu0 0
      %948 = vmatpush2.bf16.msra.mxu0 %v714
      %949 = vmatprep.subr.bf16.mxu0 0
      %950 = vmatpush2.bf16.msra.mxu0 %v713
      %951 = vmatprep.subr.bf16.mxu0 0
      %952 = vmatpush2.bf16.msra.mxu0 %v712
      %953 = vmatprep.subr.bf16.mxu0 0
      %954 = vmatpush2.bf16.msra.mxu0 %v711
      %955 = vmatprep.subr.bf16.mxu0 0
      %956 = vmatpush2.bf16.msra.mxu0 %v710
      %957 = vmatprep.subr.bf16.mxu0 0
      %958 = vmatpush2.bf16.msra.mxu0 %v709
      %959 = vmatprep.mubr.bf16.mxu0 %v258
      %960 = vmatmul.mubr.bf16.gmra.mxu0 %v257
      %v961 = vpop.f32.mrf.mxu0
      %v962 = vadd.f32 %v897, %v961
      %v963 = vpop.f32.mrf.mxu0
      %v964 = vpop.f32.mrf.mxu0
      %v965 = vadd.f32 %v900, %v964
      %v966 = vpop.f32.mrf.mxu0
      %967 = vmatprep.mubr.bf16.mxu0 %v266
      %968 = vmatmul.mubr.bf16.gmra.mxu0 %v265
      %v969 = vpop.f32.mrf.mxu0
      %v970 = vadd.f32 %v905, %v969
      %v971 = vpop.f32.mrf.mxu0
      %v972 = vpop.f32.mrf.mxu0
      %v973 = vadd.f32 %v908, %v972
      %v974 = vpop.f32.mrf.mxu0
      %975 = vmatprep.mubr.bf16.mxu0 %v274
      %976 = vmatmul.mubr.bf16.gmra.mxu0 %v273
      %v977 = vpop.f32.mrf.mxu0
      %v978 = vadd.f32 %v913, %v977
      %v979 = vpop.f32.mrf.mxu0
      %v980 = vpop.f32.mrf.mxu0
      %v981 = vadd.f32 %v916, %v980
      %v982 = vpop.f32.mrf.mxu0
      %983 = vmatprep.mubr.bf16.mxu0 %v282
      %984 = vmatmul.mubr.bf16.gmra.mxu0 %v281
      %v985 = vpop.f32.mrf.mxu0
      %v986 = vadd.f32 %v921, %v985
      %v987 = vpop.f32.mrf.mxu0
      %v988 = vpop.f32.mrf.mxu0
      %v989 = vadd.f32 %v924, %v988
      %v990 = vpop.f32.mrf.mxu0
      %991 = vdwg.mxu0
      %992 = vmatprep.subr.bf16.mxu0 0
      %993 = vmatpush1.bf16.msra.mxu0 %v724
      %994 = vmatprep.subr.bf16.mxu0 0
      %995 = vmatpush1.bf16.msra.mxu0 %v723
      %996 = vmatprep.subr.bf16.mxu0 0
      %997 = vmatpush1.bf16.msra.mxu0 %v722
      %998 = vmatprep.subr.bf16.mxu0 0
      %999 = vmatpush1.bf16.msra.mxu0 %v721
      %1000 = vmatprep.subr.bf16.mxu0 0
      %1001 = vmatpush1.bf16.msra.mxu0 %v720
      %1002 = vmatprep.subr.bf16.mxu0 0
      %1003 = vmatpush1.bf16.msra.mxu0 %v719
      %1004 = vmatprep.subr.bf16.mxu0 0
      %1005 = vmatpush1.bf16.msra.mxu0 %v718
      %1006 = vmatprep.subr.bf16.mxu0 0
      %1007 = vmatpush1.bf16.msra.mxu0 %v717
      %1008 = vmatprep.subr.bf16.mxu0 0
      %1009 = vmatpush2.bf16.msra.mxu0 %v732
      %1010 = vmatprep.subr.bf16.mxu0 0
      %1011 = vmatpush2.bf16.msra.mxu0 %v731
      %1012 = vmatprep.subr.bf16.mxu0 0
      %1013 = vmatpush2.bf16.msra.mxu0 %v730
      %1014 = vmatprep.subr.bf16.mxu0 0
      %1015 = vmatpush2.bf16.msra.mxu0 %v729
      %1016 = vmatprep.subr.bf16.mxu0 0
      %1017 = vmatpush2.bf16.msra.mxu0 %v728
      %1018 = vmatprep.subr.bf16.mxu0 0
      %1019 = vmatpush2.bf16.msra.mxu0 %v727
      %1020 = vmatprep.subr.bf16.mxu0 0
      %1021 = vmatpush2.bf16.msra.mxu0 %v726
      %1022 = vmatprep.subr.bf16.mxu0 0
      %1023 = vmatpush2.bf16.msra.mxu0 %v725
      %1024 = vmatprep.mubr.bf16.mxu0 %v260
      %1025 = vmatmul.mubr.bf16.gmra.mxu0 %v259
      %v1026 = vpop.f32.mrf.mxu0
      %v1027 = vadd.f32 %v962, %v1026
      %v1028 = vpop.f32.mrf.mxu0
      %v1029 = vpop.f32.mrf.mxu0
      %v1030 = vadd.f32 %v965, %v1029
      %v1031 = vpop.f32.mrf.mxu0
      %1032 = vmatprep.mubr.bf16.mxu0 %v268
      %1033 = vmatmul.mubr.bf16.gmra.mxu0 %v267
      %v1034 = vpop.f32.mrf.mxu0
      %v1035 = vadd.f32 %v970, %v1034
      %v1036 = vpop.f32.mrf.mxu0
      %v1037 = vpop.f32.mrf.mxu0
      %v1038 = vadd.f32 %v973, %v1037
      %v1039 = vpop.f32.mrf.mxu0
      %1040 = vmatprep.mubr.bf16.mxu0 %v276
      %1041 = vmatmul.mubr.bf16.gmra.mxu0 %v275
      %v1042 = vpop.f32.mrf.mxu0
      %v1043 = vadd.f32 %v978, %v1042
      %v1044 = vpop.f32.mrf.mxu0
      %v1045 = vpop.f32.mrf.mxu0
      %v1046 = vadd.f32 %v981, %v1045
      %v1047 = vpop.f32.mrf.mxu0
      %1048 = vmatprep.mubr.bf16.mxu0 %v284
      %1049 = vmatmul.mubr.bf16.gmra.mxu0 %v283
      %v1050 = vpop.f32.mrf.mxu0
      %v1051 = vadd.f32 %v986, %v1050
      %v1052 = vpop.f32.mrf.mxu0
      %v1053 = vpop.f32.mrf.mxu0
      %v1054 = vadd.f32 %v989, %v1053
      %v1055 = vpop.f32.mrf.mxu0
      %1056 = vdwg.mxu0
      %v1057 = vpack.c.bf16 %v1030, %v1027
      %v1058 = vpack.c.bf16 %v1038, %v1035
      %v1059 = vpack.c.bf16 %v1046, %v1043
      %v1060 = vpack.c.bf16 %v1054, %v1051
      %v1065 = vunpack.c.l.b16 %v1057
      %v1066 = vunpack.c.h.b16 %v1057
      %v1067 = vunpack.c.l.b16 %v1058
      %v1068 = vunpack.c.h.b16 %v1058
      %v1069 = vunpack.c.l.b16 %v1059
      %v1070 = vunpack.c.h.b16 %v1059
      %v1071 = vunpack.c.l.b16 %v1060
      %v1072 = vunpack.c.h.b16 %v1060
      %v1073 = vpack.c.b16 %v1065, %v1065
      %v1074 = vpack.c.b16 %v1066, %v1066
      %v1075 = vpack.c.b16 %v1067, %v1067
      %v1076 = vpack.c.b16 %v1068, %v1068
      %v1077 = vpack.c.b16 %v1069, %v1069
      %v1078 = vpack.c.b16 %v1070, %v1070
      %v1079 = vpack.c.b16 %v1071, %v1071
      %v1080 = vpack.c.b16 %v1072, %v1072
      %vm1089 = vcmask 257024
      %1090 = vst.msk [vmem:[#allocation2] sm:$0xf] %vm1089, %v1073
      %1091 = vst.msk [vmem:[#allocation2 + $0x4] sm:$0xf] %vm1089, %v1074
      %1092 = vst.msk [vmem:[#allocation2 + $0x8] sm:$0xf] %vm1089, %v1075
      %1093 = vst.msk [vmem:[#allocation2 + $0xc] sm:$0xf] %vm1089, %v1076
      %1094 = vst.msk [vmem:[#allocation2 + $0x10] sm:$0xf] %vm1089, %v1077
      %1095 = vst.msk [vmem:[#allocation2 + $0x14] sm:$0xf] %vm1089, %v1078
      %1096 = vst.msk [vmem:[#allocation2 + $0x18] sm:$0xf] %vm1089, %v1079
      %1097 = vst.msk [vmem:[#allocation2 + $0x1c] sm:$0xf] %vm1089, %v1080
    $region17: #{word2vec_forward.1} parent=1 // pred_fallthru
      _
    %v1098 = vld [vmem:[#allocation2] sm:$0xf]
    %v1099 = vld [vmem:[#allocation2 + $0x4] sm:$0xf]
    %v1100 = vld [vmem:[#allocation2 + $0x8] sm:$0xf]
    %v1101 = vld [vmem:[#allocation2 + $0xc] sm:$0xf]
    %v1102 = vld [vmem:[#allocation2 + $0x10] sm:$0xf]
    %v1103 = vld [vmem:[#allocation2 + $0x14] sm:$0xf]
    %v1104 = vld [vmem:[#allocation2 + $0x18] sm:$0xf]
    %v1105 = vld [vmem:[#allocation2 + $0x1c] sm:$0xf]
    %v1106 = vld [vmem:[%s2] sm:$0xff]
    %v1107 = vld [vmem:[%s2 + $0x8] sm:$0xff]
    %v1108 = vld [vmem:[%s2 + $0x10] sm:$0xff]
    %v1109 = vld [vmem:[%s2 + $0x18] sm:$0xff]
    %v1110 = vld [vmem:[%s2 + $0x20] sm:$0xff]
    %v1111 = vld [vmem:[%s2 + $0x28] sm:$0xff]
    %v1112 = vld [vmem:[%s2 + $0x30] sm:$0xff]
    %v1113 = vld [vmem:[%s2 + $0x38] sm:$0xff]
    %v1114 = vld [vmem:[%s2 + $0x40] sm:$0xff]
    %v1115 = vld [vmem:[%s2 + $0x48] sm:$0xff]
    %v1116 = vld [vmem:[%s2 + $0x50] sm:$0xff]
    %v1117 = vld [vmem:[%s2 + $0x58] sm:$0xff]
    %v1118 = vld [vmem:[%s2 + $0x60] sm:$0xff]
    %v1119 = vld [vmem:[%s2 + $0x68] sm:$0xff]
    %v1120 = vld [vmem:[%s2 + $0x70] sm:$0xff]
    %v1121 = vld [vmem:[%s2 + $0x78] sm:$0xff]
    %v1130 = vunpack.c.l.b16 %v1098
    %v1131 = vunpack.c.l.b16 %v1099
    %v1132 = vunpack.c.l.b16 %v1100
    %v1133 = vunpack.c.l.b16 %v1101
    %v1134 = vunpack.c.l.b16 %v1102
    %v1135 = vunpack.c.l.b16 %v1103
    %v1136 = vunpack.c.l.b16 %v1104
    %v1137 = vunpack.c.l.b16 %v1105
    %v1138 = vpack.c.b16 %v1131, %v1130
    %v1139 = vpack.c.b16 %v1133, %v1132
    %v1140 = vpack.c.b16 %v1135, %v1134
    %v1141 = vpack.c.b16 %v1137, %v1136
    %v1158 = vunpack.c.l.b16 %v1106
    %v1159 = vunpack.c.h.b16 %v1106
    %v1160 = vunpack.c.l.b16 %v1107
    %v1161 = vunpack.c.h.b16 %v1107
    %v1162 = vunpack.c.l.b16 %v1108
    %v1163 = vunpack.c.h.b16 %v1108
    %v1164 = vunpack.c.l.b16 %v1109
    %v1165 = vunpack.c.h.b16 %v1109
    %v1166 = vunpack.c.l.b16 %v1110
    %v1167 = vunpack.c.h.b16 %v1110
    %v1168 = vunpack.c.l.b16 %v1111
    %v1169 = vunpack.c.h.b16 %v1111
    %v1170 = vunpack.c.l.b16 %v1112
    %v1171 = vunpack.c.h.b16 %v1112
    %v1172 = vunpack.c.l.b16 %v1113
    %v1173 = vunpack.c.h.b16 %v1113
    %v1174 = vunpack.c.l.b16 %v1114
    %v1175 = vunpack.c.h.b16 %v1114
    %v1176 = vunpack.c.l.b16 %v1115
    %v1177 = vunpack.c.h.b16 %v1115
    %v1178 = vunpack.c.l.b16 %v1116
    %v1179 = vunpack.c.h.b16 %v1116
    %v1180 = vunpack.c.l.b16 %v1117
    %v1181 = vunpack.c.h.b16 %v1117
    %v1182 = vunpack.c.l.b16 %v1118
    %v1183 = vunpack.c.h.b16 %v1118
    %v1184 = vunpack.c.l.b16 %v1119
    %v1185 = vunpack.c.h.b16 %v1119
    %v1186 = vunpack.c.l.b16 %v1120
    %v1187 = vunpack.c.h.b16 %v1120
    %v1188 = vunpack.c.l.b16 %v1121
    %v1189 = vunpack.c.h.b16 %v1121
    %v1190 = vpack.c.b16 %v1166, %v1158
    %v1191 = vpack.c.b16 %v1167, %v1159
    %v1192 = vpack.c.b16 %v1168, %v1160
    %v1193 = vpack.c.b16 %v1169, %v1161
    %v1194 = vpack.c.b16 %v1170, %v1162
    %v1195 = vpack.c.b16 %v1171, %v1163
    %v1196 = vpack.c.b16 %v1172, %v1164
    %v1197 = vpack.c.b16 %v1173, %v1165
    %v1198 = vpack.c.b16 %v1182, %v1174
    %v1199 = vpack.c.b16 %v1183, %v1175
    %v1200 = vpack.c.b16 %v1184, %v1176
    %v1201 = vpack.c.b16 %v1185, %v1177
    %v1202 = vpack.c.b16 %v1186, %v1178
    %v1203 = vpack.c.b16 %v1187, %v1179
    %v1204 = vpack.c.b16 %v1188, %v1180
    %v1205 = vpack.c.b16 %v1189, %v1181
    %vm1222 = vcmask 261120
    %v1224 = vsel %vm1222, %v1138, 0
    %v1227 = vsel %vm1222, %v1139, 0
    %v1230 = vsel %vm1222, %v1140, 0
    %v1233 = vsel %vm1222, %v1141, 0
    %1235 = vmatprep.subr.bf16.mxu0 0
    %1236 = vmatpush1.bf16.msra.mxu0 0
    %1237 = vmatprep.subr.bf16.mxu0 0
    %1238 = vmatpush1.bf16.msra.mxu0 0
    %1239 = vmatprep.subr.bf16.mxu0 0
    %1240 = vmatpush1.bf16.msra.mxu0 0
    %1241 = vmatprep.subr.bf16.mxu0 0
    %1242 = vmatpush1.bf16.msra.mxu0 0
    %1243 = vmatprep.subr.bf16.mxu0 0
    %1244 = vmatpush1.bf16.msra.mxu0 0
    %1245 = vmatprep.subr.bf16.mxu0 0
    %1246 = vmatpush1.bf16.msra.mxu0 0
    %1247 = vmatprep.subr.bf16.mxu0 %v1199
    %1248 = vmatpush1.bf16.msra.mxu0 %v1198
    %1249 = vmatprep.subr.bf16.mxu0 %v1191
    %1250 = vmatpush1.bf16.msra.mxu0 %v1190
    %1251 = vmatprep.subr.bf16.mxu0 0
    %1252 = vmatpush2.bf16.msra.mxu0 0
    %1253 = vmatprep.subr.bf16.mxu0 0
    %1254 = vmatpush2.bf16.msra.mxu0 0
    %1255 = vmatprep.subr.bf16.mxu0 0
    %1256 = vmatpush2.bf16.msra.mxu0 0
    %1257 = vmatprep.subr.bf16.mxu0 0
    %1258 = vmatpush2.bf16.msra.mxu0 0
    %1259 = vmatprep.subr.bf16.mxu0 0
    %1260 = vmatpush2.bf16.msra.mxu0 0
    %1261 = vmatprep.subr.bf16.mxu0 0
    %1262 = vmatpush2.bf16.msra.mxu0 0
    %1263 = vmatprep.subr.bf16.mxu0 0
    %1264 = vmatpush2.bf16.msra.mxu0 0
    %1265 = vmatprep.subr.bf16.mxu0 0
    %1266 = vmatpush2.bf16.msra.mxu0 0
    %1267 = vmatprep.mubr.bf16.mxu0 0
    %1268 = vmatmul.mubr.bf16.gmra.mxu0 %v1224
    %v1269 = vpop.f32.mrf.mxu0
    %v1270 = vadd.f32 0.0, %v1269
    %v1271 = vpop.f32.mrf.mxu0
    %v1272 = vadd.f32 0.0, %v1271
    %v1273 = vpop.f32.mrf.mxu0
    %v1274 = vadd.f32 0.0, %v1273
    %v1275 = vpop.f32.mrf.mxu0
    %v1276 = vadd.f32 0.0, %v1275
    %1277 = vmatprep.mubr.bf16.mxu0 0
    %1278 = vmatmul.mubr.bf16.gmra.mxu0 %v1227
    %v1279 = vpop.f32.mrf.mxu0
    %v1280 = vadd.f32 0.0, %v1279
    %v1281 = vpop.f32.mrf.mxu0
    %v1282 = vadd.f32 0.0, %v1281
    %v1283 = vpop.f32.mrf.mxu0
    %v1284 = vadd.f32 0.0, %v1283
    %v1285 = vpop.f32.mrf.mxu0
    %v1286 = vadd.f32 0.0, %v1285
    %1287 = vmatprep.mubr.bf16.mxu0 0
    %1288 = vmatmul.mubr.bf16.gmra.mxu0 %v1230
    %v1289 = vpop.f32.mrf.mxu0
    %v1290 = vadd.f32 0.0, %v1289
    %v1291 = vpop.f32.mrf.mxu0
    %v1292 = vadd.f32 0.0, %v1291
    %v1293 = vpop.f32.mrf.mxu0
    %v1294 = vadd.f32 0.0, %v1293
    %v1295 = vpop.f32.mrf.mxu0
    %v1296 = vadd.f32 0.0, %v1295
    %1297 = vmatprep.mubr.bf16.mxu0 0
    %1298 = vmatmul.mubr.bf16.gmra.mxu0 %v1233
    %v1299 = vpop.f32.mrf.mxu0
    %v1300 = vadd.f32 0.0, %v1299
    %v1301 = vpop.f32.mrf.mxu0
    %v1302 = vadd.f32 0.0, %v1301
    %v1303 = vpop.f32.mrf.mxu0
    %v1304 = vadd.f32 0.0, %v1303
    %v1305 = vpop.f32.mrf.mxu0
    %v1306 = vadd.f32 0.0, %v1305
    %1307 = vdwg.mxu0
    %1308 = vmatprep.subr.bf16.mxu0 0
    %1309 = vmatpush1.bf16.msra.mxu0 0
    %1310 = vmatprep.subr.bf16.mxu0 0
    %1311 = vmatpush1.bf16.msra.mxu0 0
    %1312 = vmatprep.subr.bf16.mxu0 0
    %1313 = vmatpush1.bf16.msra.mxu0 0
    %1314 = vmatprep.subr.bf16.mxu0 0
    %1315 = vmatpush1.bf16.msra.mxu0 0
    %1316 = vmatprep.subr.bf16.mxu0 0
    %1317 = vmatpush1.bf16.msra.mxu0 0
    %1318 = vmatprep.subr.bf16.mxu0 0
    %1319 = vmatpush1.bf16.msra.mxu0 0
    %1320 = vmatprep.subr.bf16.mxu0 %v1201
    %1321 = vmatpush1.bf16.msra.mxu0 %v1200
    %1322 = vmatprep.subr.bf16.mxu0 %v1193
    %1323 = vmatpush1.bf16.msra.mxu0 %v1192
    %1324 = vmatprep.subr.bf16.mxu0 0
    %1325 = vmatpush2.bf16.msra.mxu0 0
    %1326 = vmatprep.subr.bf16.mxu0 0
    %1327 = vmatpush2.bf16.msra.mxu0 0
    %1328 = vmatprep.subr.bf16.mxu0 0
    %1329 = vmatpush2.bf16.msra.mxu0 0
    %1330 = vmatprep.subr.bf16.mxu0 0
    %1331 = vmatpush2.bf16.msra.mxu0 0
    %1332 = vmatprep.subr.bf16.mxu0 0
    %1333 = vmatpush2.bf16.msra.mxu0 0
    %1334 = vmatprep.subr.bf16.mxu0 0
    %1335 = vmatpush2.bf16.msra.mxu0 0
    %1336 = vmatprep.subr.bf16.mxu0 0
    %1337 = vmatpush2.bf16.msra.mxu0 0
    %1338 = vmatprep.subr.bf16.mxu0 0
    %1339 = vmatpush2.bf16.msra.mxu0 0
    %1340 = vmatprep.mubr.bf16.mxu0 0
    %1341 = vmatmul.mubr.bf16.gmra.mxu0 %v1224
    %v1342 = vpop.f32.mrf.mxu0
    %v1343 = vadd.f32 0.0, %v1342
    %v1344 = vpop.f32.mrf.mxu0
    %v1345 = vadd.f32 0.0, %v1344
    %v1346 = vpop.f32.mrf.mxu0
    %v1347 = vadd.f32 0.0, %v1346
    %v1348 = vpop.f32.mrf.mxu0
    %v1349 = vadd.f32 0.0, %v1348
    %1350 = vmatprep.mubr.bf16.mxu0 0
    %1351 = vmatmul.mubr.bf16.gmra.mxu0 %v1227
    %v1352 = vpop.f32.mrf.mxu0
    %v1353 = vadd.f32 0.0, %v1352
    %v1354 = vpop.f32.mrf.mxu0
    %v1355 = vadd.f32 0.0, %v1354
    %v1356 = vpop.f32.mrf.mxu0
    %v1357 = vadd.f32 0.0, %v1356
    %v1358 = vpop.f32.mrf.mxu0
    %v1359 = vadd.f32 0.0, %v1358
    %1360 = vmatprep.mubr.bf16.mxu0 0
    %1361 = vmatmul.mubr.bf16.gmra.mxu0 %v1230
    %v1362 = vpop.f32.mrf.mxu0
    %v1363 = vadd.f32 0.0, %v1362
    %v1364 = vpop.f32.mrf.mxu0
    %v1365 = vadd.f32 0.0, %v1364
    %v1366 = vpop.f32.mrf.mxu0
    %v1367 = vadd.f32 0.0, %v1366
    %v1368 = vpop.f32.mrf.mxu0
    %v1369 = vadd.f32 0.0, %v1368
    %1370 = vmatprep.mubr.bf16.mxu0 0
    %1371 = vmatmul.mubr.bf16.gmra.mxu0 %v1233
    %v1372 = vpop.f32.mrf.mxu0
    %v1373 = vadd.f32 0.0, %v1372
    %v1374 = vpop.f32.mrf.mxu0
    %v1375 = vadd.f32 0.0, %v1374
    %v1376 = vpop.f32.mrf.mxu0
    %v1377 = vadd.f32 0.0, %v1376
    %v1378 = vpop.f32.mrf.mxu0
    %v1379 = vadd.f32 0.0, %v1378
    %1380 = vdwg.mxu0
    %1381 = vmatprep.subr.bf16.mxu0 0
    %1382 = vmatpush1.bf16.msra.mxu0 0
    %1383 = vmatprep.subr.bf16.mxu0 0
    %1384 = vmatpush1.bf16.msra.mxu0 0
    %1385 = vmatprep.subr.bf16.mxu0 0
    %1386 = vmatpush1.bf16.msra.mxu0 0
    %1387 = vmatprep.subr.bf16.mxu0 0
    %1388 = vmatpush1.bf16.msra.mxu0 0
    %1389 = vmatprep.subr.bf16.mxu0 0
    %1390 = vmatpush1.bf16.msra.mxu0 0
    %1391 = vmatprep.subr.bf16.mxu0 0
    %1392 = vmatpush1.bf16.msra.mxu0 0
    %1393 = vmatprep.subr.bf16.mxu0 %v1203
    %1394 = vmatpush1.bf16.msra.mxu0 %v1202
    %1395 = vmatprep.subr.bf16.mxu0 %v1195
    %1396 = vmatpush1.bf16.msra.mxu0 %v1194
    %1397 = vmatprep.subr.bf16.mxu0 0
    %1398 = vmatpush2.bf16.msra.mxu0 0
    %1399 = vmatprep.subr.bf16.mxu0 0
    %1400 = vmatpush2.bf16.msra.mxu0 0
    %1401 = vmatprep.subr.bf16.mxu0 0
    %1402 = vmatpush2.bf16.msra.mxu0 0
    %1403 = vmatprep.subr.bf16.mxu0 0
    %1404 = vmatpush2.bf16.msra.mxu0 0
    %1405 = vmatprep.subr.bf16.mxu0 0
    %1406 = vmatpush2.bf16.msra.mxu0 0
    %1407 = vmatprep.subr.bf16.mxu0 0
    %1408 = vmatpush2.bf16.msra.mxu0 0
    %1409 = vmatprep.subr.bf16.mxu0 0
    %1410 = vmatpush2.bf16.msra.mxu0 0
    %1411 = vmatprep.subr.bf16.mxu0 0
    %1412 = vmatpush2.bf16.msra.mxu0 0
    %1413 = vmatprep.mubr.bf16.mxu0 0
    %1414 = vmatmul.mubr.bf16.gmra.mxu0 %v1224
    %v1415 = vpop.f32.mrf.mxu0
    %v1416 = vadd.f32 0.0, %v1415
    %v1417 = vpop.f32.mrf.mxu0
    %v1418 = vadd.f32 0.0, %v1417
    %v1419 = vpop.f32.mrf.mxu0
    %v1420 = vadd.f32 0.0, %v1419
    %v1421 = vpop.f32.mrf.mxu0
    %v1422 = vadd.f32 0.0, %v1421
    %1423 = vmatprep.mubr.bf16.mxu0 0
    %1424 = vmatmul.mubr.bf16.gmra.mxu0 %v1227
    %v1425 = vpop.f32.mrf.mxu0
    %v1426 = vadd.f32 0.0, %v1425
    %v1427 = vpop.f32.mrf.mxu0
    %v1428 = vadd.f32 0.0, %v1427
    %v1429 = vpop.f32.mrf.mxu0
    %v1430 = vadd.f32 0.0, %v1429
    %v1431 = vpop.f32.mrf.mxu0
    %v1432 = vadd.f32 0.0, %v1431
    %1433 = vmatprep.mubr.bf16.mxu0 0
    %1434 = vmatmul.mubr.bf16.gmra.mxu0 %v1230
    %v1435 = vpop.f32.mrf.mxu0
    %v1436 = vadd.f32 0.0, %v1435
    %v1437 = vpop.f32.mrf.mxu0
    %v1438 = vadd.f32 0.0, %v1437
    %v1439 = vpop.f32.mrf.mxu0
    %v1440 = vadd.f32 0.0, %v1439
    %v1441 = vpop.f32.mrf.mxu0
    %v1442 = vadd.f32 0.0, %v1441
    %1443 = vmatprep.mubr.bf16.mxu0 0
    %1444 = vmatmul.mubr.bf16.gmra.mxu0 %v1233
    %v1445 = vpop.f32.mrf.mxu0
    %v1446 = vadd.f32 0.0, %v1445
    %v1447 = vpop.f32.mrf.mxu0
    %v1448 = vadd.f32 0.0, %v1447
    %v1449 = vpop.f32.mrf.mxu0
    %v1450 = vadd.f32 0.0, %v1449
    %v1451 = vpop.f32.mrf.mxu0
    %v1452 = vadd.f32 0.0, %v1451
    %1453 = vdwg.mxu0
    %1454 = vmatprep.subr.bf16.mxu0 0
    %1455 = vmatpush1.bf16.msra.mxu0 0
    %1456 = vmatprep.subr.bf16.mxu0 0
    %1457 = vmatpush1.bf16.msra.mxu0 0
    %1458 = vmatprep.subr.bf16.mxu0 0
    %1459 = vmatpush1.bf16.msra.mxu0 0
    %1460 = vmatprep.subr.bf16.mxu0 0
    %1461 = vmatpush1.bf16.msra.mxu0 0
    %1462 = vmatprep.subr.bf16.mxu0 0
    %1463 = vmatpush1.bf16.msra.mxu0 0
    %1464 = vmatprep.subr.bf16.mxu0 0
    %1465 = vmatpush1.bf16.msra.mxu0 0
    %1466 = vmatprep.subr.bf16.mxu0 %v1205
    %1467 = vmatpush1.bf16.msra.mxu0 %v1204
    %1468 = vmatprep.subr.bf16.mxu0 %v1197
    %1469 = vmatpush1.bf16.msra.mxu0 %v1196
    %1470 = vmatprep.subr.bf16.mxu0 0
    %1471 = vmatpush2.bf16.msra.mxu0 0
    %1472 = vmatprep.subr.bf16.mxu0 0
    %1473 = vmatpush2.bf16.msra.mxu0 0
    %1474 = vmatprep.subr.bf16.mxu0 0
    %1475 = vmatpush2.bf16.msra.mxu0 0
    %1476 = vmatprep.subr.bf16.mxu0 0
    %1477 = vmatpush2.bf16.msra.mxu0 0
    %1478 = vmatprep.subr.bf16.mxu0 0
    %1479 = vmatpush2.bf16.msra.mxu0 0
    %1480 = vmatprep.subr.bf16.mxu0 0
    %1481 = vmatpush2.bf16.msra.mxu0 0
    %1482 = vmatprep.subr.bf16.mxu0 0
    %1483 = vmatpush2.bf16.msra.mxu0 0
    %1484 = vmatprep.subr.bf16.mxu0 0
    %1485 = vmatpush2.bf16.msra.mxu0 0
    %1486 = vmatprep.mubr.bf16.mxu0 0
    %1487 = vmatmul.mubr.bf16.gmra.mxu0 %v1224
    %v1488 = vpop.f32.mrf.mxu0
    %v1489 = vadd.f32 0.0, %v1488
    %v1490 = vpop.f32.mrf.mxu0
    %v1491 = vadd.f32 0.0, %v1490
    %v1492 = vpop.f32.mrf.mxu0
    %v1493 = vadd.f32 0.0, %v1492
    %v1494 = vpop.f32.mrf.mxu0
    %v1495 = vadd.f32 0.0, %v1494
    %1496 = vmatprep.mubr.bf16.mxu0 0
    %1497 = vmatmul.mubr.bf16.gmra.mxu0 %v1227
    %v1498 = vpop.f32.mrf.mxu0
    %v1499 = vadd.f32 0.0, %v1498
    %v1500 = vpop.f32.mrf.mxu0
    %v1501 = vadd.f32 0.0, %v1500
    %v1502 = vpop.f32.mrf.mxu0
    %v1503 = vadd.f32 0.0, %v1502
    %v1504 = vpop.f32.mrf.mxu0
    %v1505 = vadd.f32 0.0, %v1504
    %1506 = vmatprep.mubr.bf16.mxu0 0
    %1507 = vmatmul.mubr.bf16.gmra.mxu0 %v1230
    %v1508 = vpop.f32.mrf.mxu0
    %v1509 = vadd.f32 0.0, %v1508
    %v1510 = vpop.f32.mrf.mxu0
    %v1511 = vadd.f32 0.0, %v1510
    %v1512 = vpop.f32.mrf.mxu0
    %v1513 = vadd.f32 0.0, %v1512
    %v1514 = vpop.f32.mrf.mxu0
    %v1515 = vadd.f32 0.0, %v1514
    %1516 = vmatprep.mubr.bf16.mxu0 0
    %1517 = vmatmul.mubr.bf16.gmra.mxu0 %v1233
    %v1518 = vpop.f32.mrf.mxu0
    %v1519 = vadd.f32 0.0, %v1518
    %v1520 = vpop.f32.mrf.mxu0
    %v1521 = vadd.f32 0.0, %v1520
    %v1522 = vpop.f32.mrf.mxu0
    %v1523 = vadd.f32 0.0, %v1522
    %v1524 = vpop.f32.mrf.mxu0
    %v1525 = vadd.f32 0.0, %v1524
    %1526 = vdwg.mxu0
    %v1527 = vpack.c.bf16 %v1274, %v1270
    %v1528 = vpack.c.bf16 %v1276, %v1272
    %v1529 = vpack.c.bf16 %v1347, %v1343
    %v1530 = vpack.c.bf16 %v1349, %v1345
    %v1531 = vpack.c.bf16 %v1420, %v1416
    %v1532 = vpack.c.bf16 %v1422, %v1418
    %v1533 = vpack.c.bf16 %v1493, %v1489
    %v1534 = vpack.c.bf16 %v1495, %v1491
    %v1535 = vpack.c.bf16 %v1284, %v1280
    %v1536 = vpack.c.bf16 %v1286, %v1282
    %v1537 = vpack.c.bf16 %v1357, %v1353
    %v1538 = vpack.c.bf16 %v1359, %v1355
    %v1539 = vpack.c.bf16 %v1430, %v1426
    %v1540 = vpack.c.bf16 %v1432, %v1428
    %v1541 = vpack.c.bf16 %v1503, %v1499
    %v1542 = vpack.c.bf16 %v1505, %v1501
    %v1543 = vpack.c.bf16 %v1294, %v1290
    %v1544 = vpack.c.bf16 %v1296, %v1292
    %v1545 = vpack.c.bf16 %v1367, %v1363
    %v1546 = vpack.c.bf16 %v1369, %v1365
    %v1547 = vpack.c.bf16 %v1440, %v1436
    %v1548 = vpack.c.bf16 %v1442, %v1438
    %v1549 = vpack.c.bf16 %v1513, %v1509
    %v1550 = vpack.c.bf16 %v1515, %v1511
    %v1551 = vpack.c.bf16 %v1304, %v1300
    %v1552 = vpack.c.bf16 %v1306, %v1302
    %v1553 = vpack.c.bf16 %v1377, %v1373
    %v1554 = vpack.c.bf16 %v1379, %v1375
    %v1555 = vpack.c.bf16 %v1450, %v1446
    %v1556 = vpack.c.bf16 %v1452, %v1448
    %v1557 = vpack.c.bf16 %v1523, %v1519
    %v1558 = vpack.c.bf16 %v1525, %v1521
    %v1591 = vunpack.c.l.b16 %v1527
    %v1592 = vunpack.c.l.b16 %v1528
    %v1593 = vunpack.c.l.b16 %v1529
    %v1594 = vunpack.c.l.b16 %v1530
    %v1595 = vunpack.c.l.b16 %v1531
    %v1596 = vunpack.c.l.b16 %v1532
    %v1597 = vunpack.c.l.b16 %v1533
    %v1598 = vunpack.c.l.b16 %v1534
    %v1599 = vunpack.c.h.b16 %v1527
    %v1600 = vunpack.c.h.b16 %v1528
    %v1601 = vunpack.c.h.b16 %v1529
    %v1602 = vunpack.c.h.b16 %v1530
    %v1603 = vunpack.c.h.b16 %v1531
    %v1604 = vunpack.c.h.b16 %v1532
    %v1605 = vunpack.c.h.b16 %v1533
    %v1606 = vunpack.c.h.b16 %v1534
    %v1607 = vunpack.c.l.b16 %v1535
    %v1608 = vunpack.c.l.b16 %v1536
    %v1609 = vunpack.c.l.b16 %v1537
    %v1610 = vunpack.c.l.b16 %v1538
    %v1611 = vunpack.c.l.b16 %v1539
    %v1612 = vunpack.c.l.b16 %v1540
    %v1613 = vunpack.c.l.b16 %v1541
    %v1614 = vunpack.c.l.b16 %v1542
    %v1615 = vunpack.c.h.b16 %v1535
    %v1616 = vunpack.c.h.b16 %v1536
    %v1617 = vunpack.c.h.b16 %v1537
    %v1618 = vunpack.c.h.b16 %v1538
    %v1619 = vunpack.c.h.b16 %v1539
    %v1620 = vunpack.c.h.b16 %v1540
    %v1621 = vunpack.c.h.b16 %v1541
    %v1622 = vunpack.c.h.b16 %v1542
    %v1623 = vunpack.c.l.b16 %v1543
    %v1624 = vunpack.c.l.b16 %v1544
    %v1625 = vunpack.c.l.b16 %v1545
    %v1626 = vunpack.c.l.b16 %v1546
    %v1627 = vunpack.c.l.b16 %v1547
    %v1628 = vunpack.c.l.b16 %v1548
    %v1629 = vunpack.c.l.b16 %v1549
    %v1630 = vunpack.c.l.b16 %v1550
    %v1631 = vunpack.c.h.b16 %v1543
    %v1632 = vunpack.c.h.b16 %v1544
    %v1633 = vunpack.c.h.b16 %v1545
    %v1634 = vunpack.c.h.b16 %v1546
    %v1635 = vunpack.c.h.b16 %v1547
    %v1636 = vunpack.c.h.b16 %v1548
    %v1637 = vunpack.c.h.b16 %v1549
    %v1638 = vunpack.c.h.b16 %v1550
    %v1639 = vunpack.c.l.b16 %v1551
    %v1640 = vunpack.c.l.b16 %v1552
    %v1641 = vunpack.c.l.b16 %v1553
    %v1642 = vunpack.c.l.b16 %v1554
    %v1643 = vunpack.c.l.b16 %v1555
    %v1644 = vunpack.c.l.b16 %v1556
    %v1645 = vunpack.c.l.b16 %v1557
    %v1646 = vunpack.c.l.b16 %v1558
    %v1647 = vunpack.c.h.b16 %v1551
    %v1648 = vunpack.c.h.b16 %v1552
    %v1649 = vunpack.c.h.b16 %v1553
    %v1650 = vunpack.c.h.b16 %v1554
    %v1651 = vunpack.c.h.b16 %v1555
    %v1652 = vunpack.c.h.b16 %v1556
    %v1653 = vunpack.c.h.b16 %v1557
    %v1654 = vunpack.c.h.b16 %v1558
    %v1655 = vpack.c.b16 %v1592, %v1591
    %v1656 = vpack.c.b16 %v1594, %v1593
    %v1657 = vpack.c.b16 %v1596, %v1595
    %v1658 = vpack.c.b16 %v1598, %v1597
    %v1659 = vpack.c.b16 %v1600, %v1599
    %v1660 = vpack.c.b16 %v1602, %v1601
    %v1661 = vpack.c.b16 %v1604, %v1603
    %v1662 = vpack.c.b16 %v1606, %v1605
    %v1663 = vpack.c.b16 %v1608, %v1607
    %v1664 = vpack.c.b16 %v1610, %v1609
    %v1665 = vpack.c.b16 %v1612, %v1611
    %v1666 = vpack.c.b16 %v1614, %v1613
    %v1667 = vpack.c.b16 %v1616, %v1615
    %v1668 = vpack.c.b16 %v1618, %v1617
    %v1669 = vpack.c.b16 %v1620, %v1619
    %v1670 = vpack.c.b16 %v1622, %v1621
    %v1671 = vpack.c.b16 %v1624, %v1623
    %v1672 = vpack.c.b16 %v1626, %v1625
    %v1673 = vpack.c.b16 %v1628, %v1627
    %v1674 = vpack.c.b16 %v1630, %v1629
    %v1675 = vpack.c.b16 %v1632, %v1631
    %v1676 = vpack.c.b16 %v1634, %v1633
    %v1677 = vpack.c.b16 %v1636, %v1635
    %v1678 = vpack.c.b16 %v1638, %v1637
    %v1679 = vpack.c.b16 %v1640, %v1639
    %v1680 = vpack.c.b16 %v1642, %v1641
    %v1681 = vpack.c.b16 %v1644, %v1643
    %v1682 = vpack.c.b16 %v1646, %v1645
    %v1683 = vpack.c.b16 %v1648, %v1647
    %v1684 = vpack.c.b16 %v1650, %v1649
    %v1685 = vpack.c.b16 %v1652, %v1651
    %v1686 = vpack.c.b16 %v1654, %v1653
    %1719 = vst [vmem:[#allocation3] sm:$0xff] %v1655
    %1720 = vst [vmem:[#allocation3 + $0x8] sm:$0xff] %v1656
    %1721 = vst [vmem:[#allocation3 + $0x10] sm:$0xff] %v1657
    %1722 = vst [vmem:[#allocation3 + $0x18] sm:$0xff] %v1658
    %1723 = vst [vmem:[#allocation3 + $0x20] sm:$0xff] %v1659
    %1724 = vst [vmem:[#allocation3 + $0x28] sm:$0xff] %v1660
    %1725 = vst [vmem:[#allocation3 + $0x30] sm:$0xff] %v1661
    %1726 = vst [vmem:[#allocation3 + $0x38] sm:$0xff] %v1662
    %1727 = vst [vmem:[#allocation3 + $0x40] sm:$0xff] %v1663
    %1728 = vst [vmem:[#allocation3 + $0x48] sm:$0xff] %v1664
    %1729 = vst [vmem:[#allocation3 + $0x50] sm:$0xff] %v1665
    %1730 = vst [vmem:[#allocation3 + $0x58] sm:$0xff] %v1666
    %1731 = vst [vmem:[#allocation3 + $0x60] sm:$0xff] %v1667
    %1732 = vst [vmem:[#allocation3 + $0x68] sm:$0xff] %v1668
    %1733 = vst [vmem:[#allocation3 + $0x70] sm:$0xff] %v1669
    %1734 = vst [vmem:[#allocation3 + $0x78] sm:$0xff] %v1670
    %1735 = vst [vmem:[#allocation3 + $0x80] sm:$0xff] %v1671
    %1736 = vst [vmem:[#allocation3 + $0x88] sm:$0xff] %v1672
    %1737 = vst [vmem:[#allocation3 + $0x90] sm:$0xff] %v1673
    %1738 = vst [vmem:[#allocation3 + $0x98] sm:$0xff] %v1674
    %1739 = vst [vmem:[#allocation3 + $0xa0] sm:$0xff] %v1675
    %1740 = vst [vmem:[#allocation3 + $0xa8] sm:$0xff] %v1676
    %1741 = vst [vmem:[#allocation3 + $0xb0] sm:$0xff] %v1677
    %1742 = vst [vmem:[#allocation3 + $0xb8] sm:$0xff] %v1678
    %1743 = vst [vmem:[#allocation3 + $0xc0] sm:$0xff] %v1679
    %1744 = vst [vmem:[#allocation3 + $0xc8] sm:$0xff] %v1680
    %1745 = vst [vmem:[#allocation3 + $0xd0] sm:$0xff] %v1681
    %1746 = vst [vmem:[#allocation3 + $0xd8] sm:$0xff] %v1682
    %1747 = vst [vmem:[#allocation3 + $0xe0] sm:$0xff] %v1683
    %1748 = vst [vmem:[#allocation3 + $0xe8] sm:$0xff] %v1684
    %1749 = vst [vmem:[#allocation3 + $0xf0] sm:$0xff] %v1685
    %1750 = vst [vmem:[#allocation3 + $0xf8] sm:$0xff] %v1686
    // Predicated region
    $region18: #{word2vec_forward.1} parent=1 // pred_check
      _
    $region19: #{word2vec_forward.1} parent=1 // pred_check_branch
      %1752 = sbr.rel (0) target = $region21
    $region20: #{word2vec_forward.1} parent=1 // pred_region
      %s1754 = ssub.s32 4096, 4096
      %1755 = vsyncadd [#allocation4], %s1754
      %s1756 = sshll.u32 [#allocation3], 4
      %s1757 = int_to_ptr.vmem [resolvable:$true] %s1756
      %1762 = dma.vmem_to_hbm [thread:$0]  %s1757, 4096, %s3, [#allocation4], 512, 512, 32
    $region21: #{word2vec_forward.1} parent=1 // pred_fallthru
      _
    // Predicated region
    $region22: #{word2vec_forward.1} parent=1 // pred_check
      _
    $region23: #{word2vec_forward.1} parent=1 // pred_check_branch
      %1764 = sbr.rel (0) target = $region25
    $region24: #{word2vec_forward.1} parent=1 // pred_region
      %1765 = dma.done [#allocation4], 4096
    $region25: #{word2vec_forward.1} parent=1 // pred_fallthru
      _
    %1766 = vsyncpa [#allocation4], 1

</llo_original>
